<compile_context>
chip_gen: v7x
topology: tpu7x:2x2x1
jax: 0.10.0
libtpu: 0.0.40
codegen_flags: <defaults>
</compile_context>

<pallas_src>
import jax
import jax.numpy as jnp
from jax import lax
from jax.experimental import pallas as pl
from jax.experimental.pallas import tpu as pltpu

# ---- small, forward-consistent demo shapes (real model: S=512, H=768, F=256) ----
B = 16            # batch
TB = 8            # batch tile per grid step; grid = B/TB = 2 -> both v7x TCs busy
S = 8             # sequence length
H = 32            # hidden_size (768 in the real model)
F = 16            # num_filters (256 in the real model)
FILTER_SIZES = (2, 3, 4)
K_MAX = max(FILTER_SIZES)
NF = F * len(FILTER_SIZES)
NUM_CLASSES = 1


def bertcnn_head_kernel(x_ref, wcat_ref, bcat_ref, fcw_ref, fcb_ref, out_ref):
    """CNN head over one (TB, S, H) bf16 batch tile; all filter sizes fused."""
    tb, s, h = x_ref.shape
    rows = tb * s

    # Activations already bf16 (cast once in the wrapper); collapsing the
    # leading dims is a pure reinterpretation.  Shared by all matmuls below.
    xs = x_ref[...].reshape(rows, h)

    pooled_parts = []
    for gi, k in enumerate(FILTER_SIZES):
        c0, c1 = gi * F, (gi + 1) * F

        # Tap 0 initializes the group accumulator with the bias folded in
        # (no zeros fill + add).  Only the k taps this group actually has are
        # multiplied -- no zero-padded MXU columns.
        g = jnp.dot(xs, wcat_ref[0, :, c0:c1],
                    preferred_element_type=jnp.float32) + bcat_ref[:, c0:c1]
        for dk in range(1, k):                                  # static unroll
            y = jnp.dot(xs, wcat_ref[dk, :, c0:c1],
                        preferred_element_type=jnp.float32)
            # g[b, t] needs y[b, t + dk]; a single global sublane rotate is
            # correct because rows that wrap across a batch boundary land in
            # positions that are masked out below.
            g = g + pltpu.roll(y, shift=rows - dk, axis=0)

        g = jnp.maximum(g, 0.0)                                 # bias+ReLU, f32

        # Valid conv positions are t <= s - k; the k-1 trailing positions may
        # hold wrapped garbage -> zero them (safe: ReLU output >= 0) with a
        # tiny batch-independent (S, 1) mask, then max-pool over time.
        valid = lax.broadcasted_iota(jnp.int32, (s, 1), 0) <= (s - k)
        g3 = jnp.where(valid[None, :, :], g.reshape(tb, s, F), 0.0)
        pooled_parts.append(jnp.max(g3, axis=1))                # (TB, F)

    pooled = jnp.concatenate(pooled_parts, axis=-1)             # (TB, 3F)

    # Dropout(0.1) == identity at inference.
    # Linear(3F -> 1): VPU multiply + lane reduction (an N=1 MXU matmul would
    # waste 255/256 of the array); fc bias is an SMEM scalar.
    logits = jnp.sum(pooled * fcw_ref[...], axis=-1, keepdims=True) + fcb_ref[0, 0]
    out_ref[...] = jax.nn.sigmoid(logits)                       # (TB, 1) f32


@jax.jit
def bertcnn_head(encoder_out, wcat, bcat, fcw, fcb):
    bsz = encoder_out.shape[0]

    # bf16 activations into the kernel: halves HBM traffic and the
    # double-buffered input VMEM; all accumulation stays f32 inside.
    x = encoder_out.astype(jnp.bfloat16)

    # Don't silently drop trailing batch rows if bsz % TB != 0.
    pad = (-bsz) % TB
    if pad:
        x = jnp.pad(x, ((0, pad), (0, 0), (0, 0)))
    grid = (x.shape[0] // TB,)

    # Grid-invariant operands: single-buffer (double-buffering buys nothing
    # for a constant index_map and wastes VMEM headroom on v7x).
    resident = dict(pipeline_mode=pl.Buffered(buffer_count=1))

    out = pl.pallas_call(
        bertcnn_head_kernel,
        out_shape=jax.ShapeDtypeStruct((x.shape[0], NUM_CLASSES), jnp.float32),
        grid=grid,
        in_specs=[
            pl.BlockSpec((TB, S, H), lambda b: (b, 0, 0)),        # pipelined bf16 tile
            pl.BlockSpec((K_MAX, H, NF), lambda b: (0, 0, 0), **resident),  # conv weights
            pl.BlockSpec((1, NF), lambda b: (0, 0), **resident),            # conv bias row
            pl.BlockSpec((1, NF), lambda b: (0, 0), **resident),            # fc weight row
            pl.BlockSpec(memory_space=pltpu.MemorySpace.SMEM),    # fc bias scalar
        ],
        out_specs=pl.BlockSpec((TB, NUM_CLASSES), lambda b: (b, 0)),
        compiler_params=pltpu.CompilerParams(
            dimension_semantics=("parallel",),
            # Leaves headroom on v7x's 64 MiB/TC; v6e/v5e can raise this (and
            # TB) if larger tiles are desired -- the kernel is MXU-bound there.
            vmem_limit_bytes=56 * 1024 * 1024,
        ),
    )(x, wcat, bcat, fcw, fcb)
    return out[:bsz]


def make_params(key):
    """Deterministic synthetic parameters with the module's shapes (scaled down)."""
    ks = jax.random.split(key, 8)
    params = {}
    # Conv2d(1, F, (k, H)) weights -> squeeze input-channel dim -> (F, k, H)
    for i, k in enumerate(FILTER_SIZES):
        params[f"w{k}"] = (jax.random.normal(ks[i], (F, k, H), jnp.float32)
                           * (1.0 / jnp.sqrt(k * H)))
        params[f"b{k}"] = jax.random.normal(ks[3 + i], (1, F), jnp.float32) * 0.01
    # Linear(3F, 1): weight (1, 3F), bias (1, 1)
    params["fcw"] = (jax.random.normal(ks[6], (NUM_CLASSES, NF), jnp.float32)
                     * (1.0 / jnp.sqrt(NF)))
    params["fcb"] = jax.random.normal(ks[7], (NUM_CLASSES, NUM_CLASSES),
                                      jnp.float32) * 0.01
    return params


def pack_params(p):
    """One-time layout prep (outside the kernel): pre-transposed fused conv
    weight slab (K_MAX, H, 3F) in bf16 + fused f32 bias row.  Taps dk >= k of
    each group are zero (and never read by the kernel)."""
    wcat = jnp.zeros((K_MAX, H, NF), jnp.float32)
    bcat = jnp.zeros((1, NF), jnp.float32)
    for gi, k in enumerate(FILTER_SIZES):
        w_t = jnp.transpose(p[f"w{k}"], (1, 2, 0))       # (F, k, H) -> (k, H, F)
        wcat = wcat.at[:k, :, gi * F:(gi + 1) * F].set(w_t)
        bcat = bcat.at[:, gi * F:(gi + 1) * F].set(p[f"b{k}"])
    return wcat.astype(jnp.bfloat16), bcat, p["fcw"], p["fcb"]


if __name__ == "__main__":
    root = jax.random.PRNGKey(0)
    k_x, k_p = jax.random.split(root)

    # Stand-in for outputs[0] of the BERT encoder: (B, S, H).
    encoder_out = jax.random.normal(k_x, (B, S, H), jnp.float32)
    p = make_params(k_p)
    wcat, bcat, fcw, fcb = pack_params(p)

    out1 = jax.block_until_ready(bertcnn_head(encoder_out, wcat, bcat, fcw, fcb))

    # Pure-JAX reference with the kernel's mixed precision (bf16 matmul inputs,
    # f32 accumulation / elementwise): conv-as-shifted-matmul, relu, max-pool,
    # concat, fc, sigmoid.
    def ref(x):
        xb = x.astype(jnp.bfloat16)
        feats = []
        for k in FILTER_SIZES:
            L = S - k + 1
            acc = jnp.zeros((B, L, F), jnp.float32)
            wb = p[f"w{k}"].astype(jnp.bfloat16)
            for dk in range(k):
                acc = acc + jnp.einsum("blh,fh->blf", xb[:, dk:dk + L, :],
                                       wb[:, dk, :],
                                       preferred_element_type=jnp.float32)
            acc = jnp.maximum(acc + p[f"b{k}"].reshape(1, 1, F), 0.0)
            feats.append(acc.max(axis=1))
        feat = jnp.concatenate(feats, axis=-1)
        return jax.nn.sigmoid(feat @ p["fcw"].T + p["fcb"])

    expected = ref(encoder_out)
    assert out1.shape == (B, NUM_CLASSES)
    assert jnp.allclose(out1, expected, atol=1e-3, rtol=1e-3)
    print("KERNEL_OK")
</pallas_src>

<mosaic_0001>
module attributes {stable_mosaic.version = 11 : i64} {
  func.func @bertcnn_head_kernel(%arg0: i32, %arg1: memref<8x8x32xbf16, #tpu.memory_space<vmem>>, %arg2: memref<4x32x48xbf16, #tpu.memory_space<vmem>>, %arg3: memref<1x48xf32, #tpu.memory_space<vmem>>, %arg4: memref<1x48xf32, #tpu.memory_space<vmem>>, %arg5: memref<1x1xf32, #tpu.memory_space<smem>>, %arg6: memref<8x1xf32, #tpu.memory_space<vmem>>) attributes {dimension_semantics = [#tpu.dimension_semantics<parallel>], iteration_bounds = array<i64: 2>, scalar_prefetch = 0 : i64, scratch_operands = 0 : i64, tpu.core_type = #tpu.core_type<tc>, window_params = [{transform_indices = @transform_0, window_bounds = array<i64: 8, 8, 32>}, {pipeline_mode = #tpu.pipeline_mode<synchronous>, transform_indices = @transform_1, window_bounds = array<i64: 4, 32, 48>}, {pipeline_mode = #tpu.pipeline_mode<synchronous>, transform_indices = @transform_2, window_bounds = array<i64: 1, 48>}, {pipeline_mode = #tpu.pipeline_mode<synchronous>, transform_indices = @transform_3, window_bounds = array<i64: 1, 48>}, {transform_indices = @transform_4, window_bounds = array<i64: 1, 1>}, {transform_indices = @transform_5, window_bounds = array<i64: 8, 1>}]} {
    %c0 = arith.constant 0 : index
    %c0_0 = arith.constant 0 : index
    %c0_1 = arith.constant 0 : index
    %0 = vector.load %arg1[%c0, %c0_0, %c0_1] : memref<8x8x32xbf16, #tpu.memory_space<vmem>>, vector<8x8x32xbf16>
    %1 = vector.shape_cast %0 : vector<8x8x32xbf16> to vector<64x32xbf16>
    %c0_2 = arith.constant 0 : index
    %c0_3 = arith.constant 0 : index
    %c0_4 = arith.constant 0 : index
    %2 = vector.load %arg2[%c0_2, %c0_3, %c0_4] : memref<4x32x48xbf16, #tpu.memory_space<vmem>>, vector<1x32x16xbf16>
    %3 = vector.shape_cast %2 : vector<1x32x16xbf16> to vector<32x16xbf16>
    %cst = arith.constant dense<0.000000e+00> : vector<64x16xf32>
    %4 = tpu.matmul %1, %3, %cst {dimension_numbers = #tpu.dot_dimension_numbers<[1], [0], [0], [1], [0, 0, 1, 1], [], []>} : vector<64x32xbf16>, vector<32x16xbf16>, vector<64x16xf32> -> vector<64x16xf32>
    %c0_5 = arith.constant 0 : index
    %c0_6 = arith.constant 0 : index
    %5 = vector.load %arg3[%c0_5, %c0_6] : memref<1x48xf32, #tpu.memory_space<vmem>>, vector<1x16xf32>
    %6 = vector.broadcast %5 : vector<1x16xf32> to vector<64x16xf32>
    %7 = arith.addf %4, %6 : vector<64x16xf32>
    %c1 = arith.constant 1 : index
    %c0_7 = arith.constant 0 : index
    %c0_8 = arith.constant 0 : index
    %8 = vector.load %arg2[%c1, %c0_7, %c0_8] : memref<4x32x48xbf16, #tpu.memory_space<vmem>>, vector<1x32x16xbf16>
    %9 = vector.shape_cast %8 : vector<1x32x16xbf16> to vector<32x16xbf16>
    %cst_9 = arith.constant dense<0.000000e+00> : vector<64x16xf32>
    %10 = tpu.matmul %1, %9, %cst_9 {dimension_numbers = #tpu.dot_dimension_numbers<[1], [0], [0], [1], [0, 0, 1, 1], [], []>} : vector<64x32xbf16>, vector<32x16xbf16>, vector<64x16xf32> -> vector<64x16xf32>
    %c63_i32 = arith.constant 63 : i32
    %11 = tpu.dynamic_rotate %10 by %c63_i32 dim 0 : vector<64x16xf32>, i32 -> vector<64x16xf32>
    %12 = arith.addf %7, %11 : vector<64x16xf32>
    %cst_10 = arith.constant 0.000000e+00 : f32
    %13 = vector.broadcast %cst_10 : f32 to vector<64x16xf32>
    %14 = arith.maximumf %12, %13 : vector<64x16xf32>
    %15 = tpu.iota {dimensions = array<i32: 0>} : vector<8x1xi32>
    %c6_i32 = arith.constant 6 : i32
    %16 = vector.broadcast %c6_i32 : i32 to vector<8x1xi32>
    %17 = arith.cmpi sle, %15, %16 : vector<8x1xi32>
    %18 = vector.shape_cast %17 : vector<8x1xi1> to vector<1x8x1xi1>
    %19 = vector.shape_cast %14 : vector<64x16xf32> to vector<8x8x16xf32>
    %cst_11 = arith.constant 0.000000e+00 : f32
    %20 = vector.shape_cast %18 : vector<1x8x1xi1> to vector<1x8x1xi1>
    %21 = vector.broadcast %20 : vector<1x8x1xi1> to vector<8x8x16xi1>
    %22 = vector.broadcast %cst_11 : f32 to vector<8x8x16xf32>
    %23 = arith.select %21, %19, %22 : vector<8x8x16xi1>, vector<8x8x16xf32>
    %cst_12 = arith.constant dense<0xFF800000> : vector<8x16xf32>
    %24 = vector.multi_reduction <maximumf>, %23, %cst_12 [1] : vector<8x8x16xf32> to vector<8x16xf32>
    %c0_13 = arith.constant 0 : index
    %c0_14 = arith.constant 0 : index
    %c16 = arith.constant 16 : index
    %25 = vector.load %arg2[%c0_13, %c0_14, %c16] : memref<4x32x48xbf16, #tpu.memory_space<vmem>>, vector<1x32x16xbf16>
    %26 = vector.shape_cast %25 : vector<1x32x16xbf16> to vector<32x16xbf16>
    %cst_15 = arith.constant dense<0.000000e+00> : vector<64x16xf32>
    %27 = tpu.matmul %1, %26, %cst_15 {dimension_numbers = #tpu.dot_dimension_numbers<[1], [0], [0], [1], [0, 0, 1, 1], [], []>} : vector<64x32xbf16>, vector<32x16xbf16>, vector<64x16xf32> -> vector<64x16xf32>
    %c0_16 = arith.constant 0 : index
    %c16_17 = arith.constant 16 : index
    %28 = vector.load %arg3[%c0_16, %c16_17] : memref<1x48xf32, #tpu.memory_space<vmem>>, vector<1x16xf32>
    %29 = vector.broadcast %28 : vector<1x16xf32> to vector<64x16xf32>
    %30 = arith.addf %27, %29 : vector<64x16xf32>
    %c1_18 = arith.constant 1 : index
    %c0_19 = arith.constant 0 : index
    %c16_20 = arith.constant 16 : index
    %31 = vector.load %arg2[%c1_18, %c0_19, %c16_20] : memref<4x32x48xbf16, #tpu.memory_space<vmem>>, vector<1x32x16xbf16>
    %32 = vector.shape_cast %31 : vector<1x32x16xbf16> to vector<32x16xbf16>
    %cst_21 = arith.constant dense<0.000000e+00> : vector<64x16xf32>
    %33 = tpu.matmul %1, %32, %cst_21 {dimension_numbers = #tpu.dot_dimension_numbers<[1], [0], [0], [1], [0, 0, 1, 1], [], []>} : vector<64x32xbf16>, vector<32x16xbf16>, vector<64x16xf32> -> vector<64x16xf32>
    %c63_i32_22 = arith.constant 63 : i32
    %34 = tpu.dynamic_rotate %33 by %c63_i32_22 dim 0 : vector<64x16xf32>, i32 -> vector<64x16xf32>
    %35 = arith.addf %30, %34 : vector<64x16xf32>
    %c2 = arith.constant 2 : index
    %c0_23 = arith.constant 0 : index
    %c16_24 = arith.constant 16 : index
    %36 = vector.load %arg2[%c2, %c0_23, %c16_24] : memref<4x32x48xbf16, #tpu.memory_space<vmem>>, vector<1x32x16xbf16>
    %37 = vector.shape_cast %36 : vector<1x32x16xbf16> to vector<32x16xbf16>
    %cst_25 = arith.constant dense<0.000000e+00> : vector<64x16xf32>
    %38 = tpu.matmul %1, %37, %cst_25 {dimension_numbers = #tpu.dot_dimension_numbers<[1], [0], [0], [1], [0, 0, 1, 1], [], []>} : vector<64x32xbf16>, vector<32x16xbf16>, vector<64x16xf32> -> vector<64x16xf32>
    %c62_i32 = arith.constant 62 : i32
    %39 = tpu.dynamic_rotate %38 by %c62_i32 dim 0 : vector<64x16xf32>, i32 -> vector<64x16xf32>
    %40 = arith.addf %35, %39 : vector<64x16xf32>
    %cst_26 = arith.constant 0.000000e+00 : f32
    %41 = vector.broadcast %cst_26 : f32 to vector<64x16xf32>
    %42 = arith.maximumf %40, %41 : vector<64x16xf32>
    %43 = tpu.iota {dimensions = array<i32: 0>} : vector<8x1xi32>
    %c5_i32 = arith.constant 5 : i32
    %44 = vector.broadcast %c5_i32 : i32 to vector<8x1xi32>
    %45 = arith.cmpi sle, %43, %44 : vector<8x1xi32>
    %46 = vector.shape_cast %45 : vector<8x1xi1> to vector<1x8x1xi1>
    %47 = vector.shape_cast %42 : vector<64x16xf32> to vector<8x8x16xf32>
    %cst_27 = arith.constant 0.000000e+00 : f32
    %48 = vector.shape_cast %46 : vector<1x8x1xi1> to vector<1x8x1xi1>
    %49 = vector.broadcast %48 : vector<1x8x1xi1> to vector<8x8x16xi1>
    %50 = vector.broadcast %cst_27 : f32 to vector<8x8x16xf32>
    %51 = arith.select %49, %47, %50 : vector<8x8x16xi1>, vector<8x8x16xf32>
    %cst_28 = arith.constant dense<0xFF800000> : vector<8x16xf32>
    %52 = vector.multi_reduction <maximumf>, %51, %cst_28 [1] : vector<8x8x16xf32> to vector<8x16xf32>
    %c0_29 = arith.constant 0 : index
    %c0_30 = arith.constant 0 : index
    %c32 = arith.constant 32 : index
    %53 = vector.load %arg2[%c0_29, %c0_30, %c32] : memref<4x32x48xbf16, #tpu.memory_space<vmem>>, vector<1x32x16xbf16>
    %54 = vector.shape_cast %53 : vector<1x32x16xbf16> to vector<32x16xbf16>
    %cst_31 = arith.constant dense<0.000000e+00> : vector<64x16xf32>
    %55 = tpu.matmul %1, %54, %cst_31 {dimension_numbers = #tpu.dot_dimension_numbers<[1], [0], [0], [1], [0, 0, 1, 1], [], []>} : vector<64x32xbf16>, vector<32x16xbf16>, vector<64x16xf32> -> vector<64x16xf32>
    %c0_32 = arith.constant 0 : index
    %c32_33 = arith.constant 32 : index
    %56 = vector.load %arg3[%c0_32, %c32_33] : memref<1x48xf32, #tpu.memory_space<vmem>>, vector<1x16xf32>
    %57 = vector.broadcast %56 : vector<1x16xf32> to vector<64x16xf32>
    %58 = arith.addf %55, %57 : vector<64x16xf32>
    %c1_34 = arith.constant 1 : index
    %c0_35 = arith.constant 0 : index
    %c32_36 = arith.constant 32 : index
    %59 = vector.load %arg2[%c1_34, %c0_35, %c32_36] : memref<4x32x48xbf16, #tpu.memory_space<vmem>>, vector<1x32x16xbf16>
    %60 = vector.shape_cast %59 : vector<1x32x16xbf16> to vector<32x16xbf16>
    %cst_37 = arith.constant dense<0.000000e+00> : vector<64x16xf32>
    %61 = tpu.matmul %1, %60, %cst_37 {dimension_numbers = #tpu.dot_dimension_numbers<[1], [0], [0], [1], [0, 0, 1, 1], [], []>} : vector<64x32xbf16>, vector<32x16xbf16>, vector<64x16xf32> -> vector<64x16xf32>
    %c63_i32_38 = arith.constant 63 : i32
    %62 = tpu.dynamic_rotate %61 by %c63_i32_38 dim 0 : vector<64x16xf32>, i32 -> vector<64x16xf32>
    %63 = arith.addf %58, %62 : vector<64x16xf32>
    %c2_39 = arith.constant 2 : index
    %c0_40 = arith.constant 0 : index
    %c32_41 = arith.constant 32 : index
    %64 = vector.load %arg2[%c2_39, %c0_40, %c32_41] : memref<4x32x48xbf16, #tpu.memory_space<vmem>>, vector<1x32x16xbf16>
    %65 = vector.shape_cast %64 : vector<1x32x16xbf16> to vector<32x16xbf16>
    %cst_42 = arith.constant dense<0.000000e+00> : vector<64x16xf32>
    %66 = tpu.matmul %1, %65, %cst_42 {dimension_numbers = #tpu.dot_dimension_numbers<[1], [0], [0], [1], [0, 0, 1, 1], [], []>} : vector<64x32xbf16>, vector<32x16xbf16>, vector<64x16xf32> -> vector<64x16xf32>
    %c62_i32_43 = arith.constant 62 : i32
    %67 = tpu.dynamic_rotate %66 by %c62_i32_43 dim 0 : vector<64x16xf32>, i32 -> vector<64x16xf32>
    %68 = arith.addf %63, %67 : vector<64x16xf32>
    %c3 = arith.constant 3 : index
    %c0_44 = arith.constant 0 : index
    %c32_45 = arith.constant 32 : index
    %69 = vector.load %arg2[%c3, %c0_44, %c32_45] : memref<4x32x48xbf16, #tpu.memory_space<vmem>>, vector<1x32x16xbf16>
    %70 = vector.shape_cast %69 : vector<1x32x16xbf16> to vector<32x16xbf16>
    %cst_46 = arith.constant dense<0.000000e+00> : vector<64x16xf32>
    %71 = tpu.matmul %1, %70, %cst_46 {dimension_numbers = #tpu.dot_dimension_numbers<[1], [0], [0], [1], [0, 0, 1, 1], [], []>} : vector<64x32xbf16>, vector<32x16xbf16>, vector<64x16xf32> -> vector<64x16xf32>
    %c61_i32 = arith.constant 61 : i32
    %72 = tpu.dynamic_rotate %71 by %c61_i32 dim 0 : vector<64x16xf32>, i32 -> vector<64x16xf32>
    %73 = arith.addf %68, %72 : vector<64x16xf32>
    %cst_47 = arith.constant 0.000000e+00 : f32
    %74 = vector.broadcast %cst_47 : f32 to vector<64x16xf32>
    %75 = arith.maximumf %73, %74 : vector<64x16xf32>
    %76 = tpu.iota {dimensions = array<i32: 0>} : vector<8x1xi32>
    %c4_i32 = arith.constant 4 : i32
    %77 = vector.broadcast %c4_i32 : i32 to vector<8x1xi32>
    %78 = arith.cmpi sle, %76, %77 : vector<8x1xi32>
    %79 = vector.shape_cast %78 : vector<8x1xi1> to vector<1x8x1xi1>
    %80 = vector.shape_cast %75 : vector<64x16xf32> to vector<8x8x16xf32>
    %cst_48 = arith.constant 0.000000e+00 : f32
    %81 = vector.shape_cast %79 : vector<1x8x1xi1> to vector<1x8x1xi1>
    %82 = vector.broadcast %81 : vector<1x8x1xi1> to vector<8x8x16xi1>
    %83 = vector.broadcast %cst_48 : f32 to vector<8x8x16xf32>
    %84 = arith.select %82, %80, %83 : vector<8x8x16xi1>, vector<8x8x16xf32>
    %cst_49 = arith.constant dense<0xFF800000> : vector<8x16xf32>
    %85 = vector.multi_reduction <maximumf>, %84, %cst_49 [1] : vector<8x8x16xf32> to vector<8x16xf32>
    %86 = tpu.concatenate %24, %52, %85 in 1 : vector<8x16xf32>, vector<8x16xf32>, vector<8x16xf32> -> vector<8x48xf32>
    %c0_50 = arith.constant 0 : index
    %c0_51 = arith.constant 0 : index
    %87 = vector.load %arg4[%c0_50, %c0_51] : memref<1x48xf32, #tpu.memory_space<vmem>>, vector<1x48xf32>
    %88 = vector.broadcast %87 : vector<1x48xf32> to vector<8x48xf32>
    %89 = arith.mulf %86, %88 : vector<8x48xf32>
    %cst_52 = arith.constant dense<0.000000e+00> : vector<8xf32>
    %90 = vector.multi_reduction <add>, %89, %cst_52 [1] : vector<8x48xf32> to vector<8xf32>
    %91 = vector.shape_cast %90 : vector<8xf32> to vector<8x1xf32>
    %c0_53 = arith.constant 0 : index
    %c0_54 = arith.constant 0 : index
    %92 = memref.load %arg5[%c0_53, %c0_54] : memref<1x1xf32, #tpu.memory_space<smem>>
    %93 = vector.broadcast %92 : f32 to vector<8x1xf32>
    %94 = arith.addf %91, %93 : vector<8x1xf32>
    %95 = arith.negf %94 : vector<8x1xf32>
    %96 = math.exp %95 : vector<8x1xf32>
    %cst_55 = arith.constant 1.000000e+00 : f32
    %97 = vector.broadcast %cst_55 : f32 to vector<8x1xf32>
    %98 = arith.addf %97, %96 : vector<8x1xf32>
    %99 = arith.divf %97, %98 : vector<8x1xf32>
    %c0_56 = arith.constant 0 : index
    %c0_57 = arith.constant 0 : index
    %100 = vector.load %arg6[%c0_56, %c0_57] : memref<8x1xf32, #tpu.memory_space<vmem>>, vector<8x1xf32>
    tpu.vector_store %arg6[%c0_56, %c0_57], %99 {strides = array<i32>} : memref<8x1xf32, #tpu.memory_space<vmem>>, vector<8x1xf32>,
    return
  }
  func.func @transform_0(%arg0: i32) -> (i32, i32, i32) {
    %c0_i32 = arith.constant 0 : i32
    %c0_i32_0 = arith.constant 0 : i32
    %c0_i32_1 = arith.constant 0 : i32
    return %arg0, %c0_i32, %c0_i32_0 : i32, i32, i32
  }
  func.func @transform_1(%arg0: i32) -> (i32, i32, i32) {
    %c0_i32 = arith.constant 0 : i32
    %c0_i32_0 = arith.constant 0 : i32
    %c0_i32_1 = arith.constant 0 : i32
    %c0_i32_2 = arith.constant 0 : i32
    return %c0_i32, %c0_i32_0, %c0_i32_1 : i32, i32, i32
  }
  func.func @transform_2(%arg0: i32) -> (i32, i32) {
    %c0_i32 = arith.constant 0 : i32
    %c0_i32_0 = arith.constant 0 : i32
    %c0_i32_1 = arith.constant 0 : i32
    return %c0_i32, %c0_i32_0 : i32, i32
  }
  func.func @transform_3(%arg0: i32) -> (i32, i32) {
    %c0_i32 = arith.constant 0 : i32
    %c0_i32_0 = arith.constant 0 : i32
    %c0_i32_1 = arith.constant 0 : i32
    return %c0_i32, %c0_i32_0 : i32, i32
  }
  func.func @transform_4(%arg0: i32) -> (i32, i32) {
    %c0_i32 = arith.constant 0 : i32
    %c0_i32_0 = arith.constant 0 : i32
    %c0_i32_1 = arith.constant 0 : i32
    return %c0_i32, %c0_i32_0 : i32, i32
  }
  func.func @transform_5(%arg0: i32) -> (i32, i32) {
    %c0_i32 = arith.constant 0 : i32
    %c0_i32_0 = arith.constant 0 : i32
    return %arg0, %c0_i32 : i32, i32
  }
}

</mosaic_0001>

<llo_original>
// kernel: bertcnn_head.1
$region0: #{bertcnn_head.1}
  #allocation0 [shape = 'u32[]', space=smem, size = 0x4, offset = 0x4, fixed_abs, tag = 'smem constant byte address 0x4 - core index']
  #allocation1 [shape = 'u32[144,128]{1,0:T(1,128)}', space=vmem, size = 0x12000, scoped, tag = 'internal scratch']
  #allocation2 [shape = 'f32[1,1]{1,0:T(1,128)S(6)}', space=smem, size = 0x200, scoped, tag = 'scoped memory for bertcnn_head.1']
  %s0 = inlined_call_operand.vmem [shape: bf16[16,8,32], index: 0, kind: input, shape index: {}]
  %s1 = inlined_call_operand.vmem [shape: bf16[4,32,48], index: 1, kind: input, shape index: {}]
  %s2 = inlined_call_operand.vmem [shape: f32[1,48], index: 2, kind: input, shape index: {}]
  %s3 = inlined_call_operand.vmem [shape: f32[1,48], index: 3, kind: input, shape index: {}]
  %s4 = inlined_call_operand.<no memory space> [shape: f32[1,1], index: 4, kind: input, shape index: {}]
  %s5 = inlined_call_operand.vmem [shape: f32[16,1], index: 5, kind: output, shape index: {}]
  %s6 = sld [smem:[#allocation0]]
  $region53: #{bertcnn_head.1} parent=0
    _
  %s8 = ssub.s32 1, %s6
  %s9 = scalar_select 0, %s8, %s6
  %10 = sst [smem:[#allocation2]] %s4
  loop: start=0, step=1, limit=4
  $region2: #{bertcnn_head.1} parent=0 // loop_pre_header
    _
  $region3: #{bertcnn_head.1} parent=0 // loop_header
    %s12 = sphi 0, %s16
    %p13 = scmp.ge.s32.totalorder %s12, 4
    %s22 = sphi 0, %s24
    %s25 = sphi 0, %s22
    %s26 = sphi 0, %s25
    %s42 = sphi 0, %s26
    %s46 = sphi 0, %s46
    %s48 = sphi 0, %s46
    %s49 = sphi 0, %s48
    %s63 = sphi 0, %s49
    %s67 = sphi 0, %s67
    %s69 = sphi 0, %s67
    %s70 = sphi 0, %s69
    %s84 = sphi 0, %s70
    %s88 = sphi 0, %s88
    %s90 = sphi 0, %s88
    %s91 = sphi 0, %s90
    %s105 = sphi 0, %s91
    %s109 = sphi 0, %s109
    %s111 = sphi 0, %s109
    %s112 = sphi 0, %s111
    %s126 = sphi 0, %s112
    %s132 = sphi 0, %s134
    %s135 = sphi 0, %s132
    %s136 = sphi 0, %s135
    %s152 = sphi 0, %s136
  $region4: #{bertcnn_head.1} parent=0 // loop_header_branch
    %15 = sbr.rel (%p13) target = $region8
  $region5: #{bertcnn_head.1} parent=0 // loop_body
    %s17 = ssub.s32 %s12, 1
    %s18 = ssub.s32 %s12, 2
    %s19 = sadd.s32 %s12, 1
    %s20 = ssub.s32 %s12, %s19
    %p21 = scmp.eq.s32.totalorder %s20, 0
    %s23 = sadd.s32 %s22, 1
    %s24 = scalar_select %p21, %s22, %s23
    %p27 = pneg %p21
    %p28 = scmp.eq.s32.totalorder %s12, 1
    %p29 = por %p27, %p28
    %p30 = scmp.ne.s32.totalorder %s22, %s25
    %p31 = scmp.eq.s32.totalorder %s12, 0
    %p32 = por %p30, %p31
    %p33 = scmp.ne.s32.totalorder %s22, %s25
    %p34 = scmp.eq.s32.totalorder %s17, 1
    %p35 = por %p33, %p34
    %p36 = scmp.ne.s32.totalorder %s25, %s26
    %p37 = scmp.eq.s32.totalorder %s17, 0
    %p38 = por %p36, %p37
    %p39 = scmp.ne.s32.totalorder %s25, %s26
    %p40 = scmp.eq.s32.totalorder %s18, 1
    %p41 = por %p39, %p40
    %p43 = scmp.ne.s32.totalorder %s26, %s42
    %p44 = scmp.eq.s32.totalorder %s18, 0
    %p45 = por %p43, %p44
    %s47 = sadd.s32 %s46, 1
    %p50 = scmp.eq.s32.totalorder %s12, 1
    %p51 = scmp.ne.s32.totalorder %s46, %s48
    %p52 = scmp.eq.s32.totalorder %s12, 0
    %p53 = por %p51, %p52
    %p54 = scmp.ne.s32.totalorder %s46, %s48
    %p55 = scmp.eq.s32.totalorder %s17, 1
    %p56 = por %p54, %p55
    %p57 = scmp.ne.s32.totalorder %s48, %s49
    %p58 = scmp.eq.s32.totalorder %s17, 0
    %p59 = por %p57, %p58
    %p60 = scmp.ne.s32.totalorder %s48, %s49
    %p61 = scmp.eq.s32.totalorder %s18, 1
    %p62 = por %p60, %p61
    %p64 = scmp.ne.s32.totalorder %s49, %s63
    %p65 = scmp.eq.s32.totalorder %s18, 0
    %p66 = por %p64, %p65
    %s68 = sadd.s32 %s67, 1
    %p71 = scmp.eq.s32.totalorder %s12, 1
    %p72 = scmp.ne.s32.totalorder %s67, %s69
    %p73 = scmp.eq.s32.totalorder %s12, 0
    %p74 = por %p72, %p73
    %p75 = scmp.ne.s32.totalorder %s67, %s69
    %p76 = scmp.eq.s32.totalorder %s17, 1
    %p77 = por %p75, %p76
    %p78 = scmp.ne.s32.totalorder %s69, %s70
    %p79 = scmp.eq.s32.totalorder %s17, 0
    %p80 = por %p78, %p79
    %p81 = scmp.ne.s32.totalorder %s69, %s70
    %p82 = scmp.eq.s32.totalorder %s18, 1
    %p83 = por %p81, %p82
    %p85 = scmp.ne.s32.totalorder %s70, %s84
    %p86 = scmp.eq.s32.totalorder %s18, 0
    %p87 = por %p85, %p86
    %s89 = sadd.s32 %s88, 1
    %p92 = scmp.eq.s32.totalorder %s12, 1
    %p93 = scmp.ne.s32.totalorder %s88, %s90
    %p94 = scmp.eq.s32.totalorder %s12, 0
    %p95 = por %p93, %p94
    %p96 = scmp.ne.s32.totalorder %s88, %s90
    %p97 = scmp.eq.s32.totalorder %s17, 1
    %p98 = por %p96, %p97
    %p99 = scmp.ne.s32.totalorder %s90, %s91
    %p100 = scmp.eq.s32.totalorder %s17, 0
    %p101 = por %p99, %p100
    %p102 = scmp.ne.s32.totalorder %s90, %s91
    %p103 = scmp.eq.s32.totalorder %s18, 1
    %p104 = por %p102, %p103
    %p106 = scmp.ne.s32.totalorder %s91, %s105
    %p107 = scmp.eq.s32.totalorder %s18, 0
    %p108 = por %p106, %p107
    %s110 = sadd.s32 %s109, 1
    %p113 = scmp.eq.s32.totalorder %s12, 1
    %p114 = scmp.ne.s32.totalorder %s109, %s111
    %p115 = scmp.eq.s32.totalorder %s12, 0
    %p116 = por %p114, %p115
    %p117 = scmp.ne.s32.totalorder %s109, %s111
    %p118 = scmp.eq.s32.totalorder %s17, 1
    %p119 = por %p117, %p118
    %p120 = scmp.ne.s32.totalorder %s111, %s112
    %p121 = scmp.eq.s32.totalorder %s17, 0
    %p122 = por %p120, %p121
    %p123 = scmp.ne.s32.totalorder %s111, %s112
    %p124 = scmp.eq.s32.totalorder %s18, 1
    %p125 = por %p123, %p124
    %p127 = scmp.ne.s32.totalorder %s112, %s126
    %p128 = scmp.eq.s32.totalorder %s18, 0
    %p129 = por %p127, %p128
    %s130 = ssub.s32 %s12, %s19
    %p131 = scmp.eq.s32.totalorder %s130, 0
    %s133 = sadd.s32 %s132, 1
    %s134 = scalar_select %p131, %s132, %s133
    %p137 = pneg %p131
    %p138 = scmp.eq.s32.totalorder %s12, 1
    %p139 = por %p137, %p138
    %p140 = scmp.ne.s32.totalorder %s132, %s135
    %p141 = scmp.eq.s32.totalorder %s12, 0
    %p142 = por %p140, %p141
    %p143 = scmp.ne.s32.totalorder %s132, %s135
    %p144 = scmp.eq.s32.totalorder %s17, 1
    %p145 = por %p143, %p144
    %p146 = scmp.ne.s32.totalorder %s135, %s136
    %p147 = scmp.eq.s32.totalorder %s17, 0
    %p148 = por %p146, %p147
    %p149 = scmp.ne.s32.totalorder %s135, %s136
    %p150 = scmp.eq.s32.totalorder %s18, 1
    %p151 = por %p149, %p150
    %p153 = scmp.ne.s32.totalorder %s136, %s152
    %p154 = scmp.eq.s32.totalorder %s18, 0
    %p155 = por %p153, %p154
    %p156 = scmp.le.s32.totalorder 1, %s12
    %p157 = scmp.lt.s32.totalorder %s12, 3
    %p158 = pnand %p156, %p157
    %p159 = pneg %p158
    // Predicated region
    $region9: #{bertcnn_head.1} parent=5 // pred_check
      _
    $region10: #{bertcnn_head.1} parent=5 // pred_check_branch
      %161 = sbr.rel (%p158) target = $region12
    $region11: #{bertcnn_head.1} parent=5 // pred_region
      %s162 = ssub.s32 %s12, 1
      // Predicated region
      $region13: #{bertcnn_head.1} parent=11 // pred_check
        %p163 = pneg %p59
      $region14: #{bertcnn_head.1} parent=11 // pred_check_branch
        %165 = sbr.rel (%p163) target = $region16
      $region15: #{bertcnn_head.1} parent=11 // pred_region
        _
      $region16: #{bertcnn_head.1} parent=11 // pred_fallthru
        _
      // Predicated region
      $region17: #{bertcnn_head.1} parent=11 // pred_check
        %p166 = pneg %p80
      $region18: #{bertcnn_head.1} parent=11 // pred_check_branch
        %168 = sbr.rel (%p166) target = $region20
      $region19: #{bertcnn_head.1} parent=11 // pred_region
        _
      $region20: #{bertcnn_head.1} parent=11 // pred_fallthru
        _
      // Predicated region
      $region21: #{bertcnn_head.1} parent=11 // pred_check
        %p169 = pneg %p101
      $region22: #{bertcnn_head.1} parent=11 // pred_check_branch
        %171 = sbr.rel (%p169) target = $region24
      $region23: #{bertcnn_head.1} parent=11 // pred_region
        _
      $region24: #{bertcnn_head.1} parent=11 // pred_fallthru
        _
      // Predicated region
      $region25: #{bertcnn_head.1} parent=11 // pred_check
        %p172 = pneg %p122
      $region26: #{bertcnn_head.1} parent=11 // pred_check_branch
        %174 = sbr.rel (%p172) target = $region28
      $region27: #{bertcnn_head.1} parent=11 // pred_region
        _
      $region28: #{bertcnn_head.1} parent=11 // pred_fallthru
        _
    $region12: #{bertcnn_head.1} parent=5 // pred_fallthru
      _
    %p175 = scmp.lt.s32.totalorder %s12, 2
    // Predicated region
    $region29: #{bertcnn_head.1} parent=5 // pred_check
      %p176 = pneg %p175
    $region30: #{bertcnn_head.1} parent=5 // pred_check_branch
      %178 = sbr.rel (%p176) target = $region32
    $region31: #{bertcnn_head.1} parent=5 // pred_region
      // Predicated region
      $region33: #{bertcnn_head.1} parent=31 // pred_check
        %p179 = pneg %p32
      $region34: #{bertcnn_head.1} parent=31 // pred_check_branch
        %181 = sbr.rel (%p179) target = $region36
      $region35: #{bertcnn_head.1} parent=31 // pred_region
        %s182 = smul.u32 8, %s12
        %p183 = scmp.lt.s32.totalorder %s182, 15
        %s184 = scalar_select %p183, %s182, 15
        %s185 = smul.addr %s184, 4
        %s186 = scalar_lea.vmem %s0, %s185
        %s187 = smul.u32 8, %s12
      $region36: #{bertcnn_head.1} parent=31 // pred_fallthru
        _
    $region32: #{bertcnn_head.1} parent=5 // pred_fallthru
      _
    %p188 = scmp.le.s32.totalorder 1, %s12
    %p189 = scmp.lt.s32.totalorder %s12, 3
    %p190 = pnand %p188, %p189
    %p191 = pneg %p190
    // Predicated region
    $region37: #{bertcnn_head.1} parent=5 // pred_check
      _
    $region38: #{bertcnn_head.1} parent=5 // pred_check_branch
      %193 = sbr.rel (%p190) target = $region40
    $region39: #{bertcnn_head.1} parent=5 // pred_region
      %s194 = ssub.s32 %s12, 1
      %s195 = smul.u32 8, %s17
      %p196 = scmp.lt.s32.totalorder %s195, 15
      %s197 = scalar_select %p196, %s195, 15
      %s198 = smul.addr %s197, 4
      %s199 = scalar_lea.vmem %s0, %s198
      %p200 = pneg %p38
      %p201 = pneg %p35
      %p202 = pneg %p59
      %p203 = pneg %p56
      %p204 = pneg %p80
      %p205 = pneg %p77
      %p206 = pneg %p101
      %p207 = pneg %p98
      %p208 = pneg %p122
      %p209 = pneg %p119
      %p210 = pneg %p148
      %p211 = pneg %p145
      %p212 = scmp.lt.s32.totalorder %s17, 1
      %s213 = scalar_select %p212, %s17, 1
      %s214 = smul.addr %s213, 8
      %s215 = scalar_lea.vmem %s5, %s214
      %s216 = smul.u32 8, %s17
      %p217 = scmp.lt.s32.totalorder %s216, 15
      %s218 = scalar_select %p217, %s216, 15
      %s219 = smul.addr %s218, 4
      %s220 = scalar_lea.vmem %s0, %s219
      %s221 = smul.u32 8, %s17
      %p222 = scmp.lt.s32.totalorder %s17, 1
      %s223 = scalar_select %p222, %s17, 1
      %s224 = smul.addr %s223, 8
      %s225 = scalar_lea.vmem %s5, %s224
      %v227 = vld [vmem:[%s220] sm:$0xf]
      %v228 = vld [vmem:[%s220 + $0x4] sm:$0xf]
      %v229 = vld [vmem:[%s220 + $0x8] sm:$0xf]
      %v230 = vld [vmem:[%s220 + $0xc] sm:$0xf]
      %v231 = vld [vmem:[%s220 + $0x10] sm:$0xf]
      %v232 = vld [vmem:[%s220 + $0x14] sm:$0xf]
      %v233 = vld [vmem:[%s220 + $0x18] sm:$0xf]
      %v234 = vld [vmem:[%s220 + $0x1c] sm:$0xf]
      %v235 = vld [vmem:[%s1] sm:$0xf]
      %v236 = vld [vmem:[%s1 + $0x4] sm:$0xf]
      %v237 = vld [vmem:[%s1 + $0x8] sm:$0xf]
      %v238 = vld [vmem:[%s1 + $0xc] sm:$0xf]
      %v239 = vld [vmem:[%s2] sm:$0x1]
      %v241 = vlaneseq
      %v242 = vshrl.u32 %v241, 7
      %v243 = vsub.s32 0, %v242
      %v244 = vrot.slane %v239, %v243
      %v254 = vunpack.c.l.b16 %v227
      %v255 = vunpack.c.l.b16 %v228
      %v256 = vunpack.c.l.b16 %v229
      %v257 = vunpack.c.l.b16 %v230
      %v258 = vunpack.c.l.b16 %v231
      %v259 = vunpack.c.l.b16 %v232
      %v260 = vunpack.c.l.b16 %v233
      %v261 = vunpack.c.l.b16 %v234
      %v262 = vpack.c.b16 %v255, %v254
      %v263 = vpack.c.b16 %v257, %v256
      %v264 = vpack.c.b16 %v259, %v258
      %v265 = vpack.c.b16 %v261, %v260
      %v270 = vunpack.c.l.b16 %v235
      %v271 = vunpack.c.l.b16 %v236
      %v272 = vunpack.c.l.b16 %v237
      %v273 = vunpack.c.l.b16 %v238
      %v274 = vpack.c.b16 %v271, %v270
      %v275 = vpack.c.b16 %v273, %v272
      %vm278 = vcmask 261120
      %v280 = vsel %vm278, %v262, 0
      %v283 = vsel %vm278, %v263, 0
      %v286 = vsel %vm278, %v264, 0
      %v289 = vsel %vm278, %v265, 0
      %291 = vmatprep.subr.bf16.mxu0 0
      %292 = vmatpush1.bf16.msra.mxu0 %v274
      %293 = vmatprep.subr.bf16.mxu0 0
      %294 = vmatpush1.bf16.msra.mxu0 %v275
      %295 = vmatprep.subr.bf16.mxu0 0
      %296 = vmatpush1.bf16.msra.mxu0 0
      %297 = vmatprep.subr.bf16.mxu0 0
      %298 = vmatpush1.bf16.msra.mxu0 0
      %299 = vmatprep.subr.bf16.mxu0 0
      %300 = vmatpush1.bf16.msra.mxu0 0
      %301 = vmatprep.subr.bf16.mxu0 0
      %302 = vmatpush1.bf16.msra.mxu0 0
      %303 = vmatprep.subr.bf16.mxu0 0
      %304 = vmatpush1.bf16.msra.mxu0 0
      %305 = vmatprep.subr.bf16.mxu0 0
      %306 = vmatpush1.bf16.msra.mxu0 0
      %307 = vmatprep.subr.bf16.mxu0 0
      %308 = vmatpush1.bf16.msra.mxu0 0
      %309 = vmatprep.subr.bf16.mxu0 0
      %310 = vmatpush1.bf16.msra.mxu0 0
      %311 = vmatprep.subr.bf16.mxu0 0
      %312 = vmatpush1.bf16.msra.mxu0 0
      %313 = vmatprep.subr.bf16.mxu0 0
      %314 = vmatpush1.bf16.msra.mxu0 0
      %315 = vmatprep.subr.bf16.mxu0 0
      %316 = vmatpush1.bf16.msra.mxu0 0
      %317 = vmatprep.subr.bf16.mxu0 0
      %318 = vmatpush1.bf16.msra.mxu0 0
      %319 = vmatprep.subr.bf16.mxu0 0
      %320 = vmatpush1.bf16.msra.mxu0 0
      %321 = vmatprep.subr.bf16.mxu0 0
      %322 = vmatpush1.bf16.msra.mxu0 0
      %323 = vmatprep.mubr.bf16.mxu0 0
      %324 = vmatmul.mubr.bf16.gmra.mrb[0].mxu0 %v280
      %v325 = vpop.f32.mrb[0].mxu0
      %v326 = vadd.f32 %v244, %v325
      %v327 = vpop.f32.mrb[0].mxu0
      %v328 = vpop.f32.mrb[0].mxu0
      %v329 = vadd.f32 %v244, %v328
      %v330 = vpop.f32.mrb[0].mxu0
      %331 = vmatprep.mubr.bf16.mxu0 0
      %332 = vmatmul.mubr.bf16.gmra.mrb[0].mxu0 %v283
      %v333 = vpop.f32.mrb[0].mxu0
      %v334 = vadd.f32 %v244, %v333
      %v335 = vpop.f32.mrb[0].mxu0
      %v336 = vpop.f32.mrb[0].mxu0
      %v337 = vadd.f32 %v244, %v336
      %v338 = vpop.f32.mrb[0].mxu0
      %339 = vmatprep.mubr.bf16.mxu0 0
      %340 = vmatmul.mubr.bf16.gmra.mrb[0].mxu0 %v286
      %v341 = vpop.f32.mrb[0].mxu0
      %v342 = vadd.f32 %v244, %v341
      %v343 = vpop.f32.mrb[0].mxu0
      %v344 = vpop.f32.mrb[0].mxu0
      %v345 = vadd.f32 %v244, %v344
      %v346 = vpop.f32.mrb[0].mxu0
      %347 = vmatprep.mubr.bf16.mxu0 0
      %348 = vmatmul.mubr.bf16.gmra.mrb[0].mxu0 %v289
      %v349 = vpop.f32.mrb[0].mxu0
      %v350 = vadd.f32 %v244, %v349
      %v351 = vpop.f32.mrb[0].mxu0
      %v352 = vpop.f32.mrb[0].mxu0
      %v353 = vadd.f32 %v244, %v352
      %v354 = vpop.f32.mrb[0].mxu0
      %355 = vdwg.mxu0
      %s356 = scalar_lea.vmem %s1, 16
      %v357 = vld [vmem:[%s356] sm:$0xf]
      %v358 = vld [vmem:[%s356 + $0x4] sm:$0xf]
      %v359 = vld [vmem:[%s356 + $0x8] sm:$0xf]
      %v360 = vld [vmem:[%s356 + $0xc] sm:$0xf]
      %v365 = vunpack.c.l.b16 %v357
      %v366 = vunpack.c.l.b16 %v358
      %v367 = vunpack.c.l.b16 %v359
      %v368 = vunpack.c.l.b16 %v360
      %v369 = vpack.c.b16 %v366, %v365
      %v370 = vpack.c.b16 %v368, %v367
      %373 = vmatprep.subr.bf16.mxu0 0
      %374 = vmatpush1.bf16.msra.mxu0 %v369
      %375 = vmatprep.subr.bf16.mxu0 0
      %376 = vmatpush1.bf16.msra.mxu0 %v370
      %377 = vmatprep.subr.bf16.mxu0 0
      %378 = vmatpush1.bf16.msra.mxu0 0
      %379 = vmatprep.subr.bf16.mxu0 0
      %380 = vmatpush1.bf16.msra.mxu0 0
      %381 = vmatprep.subr.bf16.mxu0 0
      %382 = vmatpush1.bf16.msra.mxu0 0
      %383 = vmatprep.subr.bf16.mxu0 0
      %384 = vmatpush1.bf16.msra.mxu0 0
      %385 = vmatprep.subr.bf16.mxu0 0
      %386 = vmatpush1.bf16.msra.mxu0 0
      %387 = vmatprep.subr.bf16.mxu0 0
      %388 = vmatpush1.bf16.msra.mxu0 0
      %389 = vmatprep.subr.bf16.mxu0 0
      %390 = vmatpush1.bf16.msra.mxu0 0
      %391 = vmatprep.subr.bf16.mxu0 0
      %392 = vmatpush1.bf16.msra.mxu0 0
      %393 = vmatprep.subr.bf16.mxu0 0
      %394 = vmatpush1.bf16.msra.mxu0 0
      %395 = vmatprep.subr.bf16.mxu0 0
      %396 = vmatpush1.bf16.msra.mxu0 0
      %397 = vmatprep.subr.bf16.mxu0 0
      %398 = vmatpush1.bf16.msra.mxu0 0
      %399 = vmatprep.subr.bf16.mxu0 0
      %400 = vmatpush1.bf16.msra.mxu0 0
      %401 = vmatprep.subr.bf16.mxu0 0
      %402 = vmatpush1.bf16.msra.mxu0 0
      %403 = vmatprep.subr.bf16.mxu0 0
      %404 = vmatpush1.bf16.msra.mxu0 0
      %405 = vmatprep.mubr.bf16.mxu0 0
      %406 = vmatmul.mubr.bf16.gmra.mrb[0].mxu0 %v280
      %v407 = vpop.f32.mrb[0].mxu0
      %v408 = vadd.f32 0.0, %v407
      %v409 = vpop.f32.mrb[0].mxu0
      %v410 = vpop.f32.mrb[0].mxu0
      %v411 = vadd.f32 0.0, %v410
      %v412 = vpop.f32.mrb[0].mxu0
      %413 = vmatprep.mubr.bf16.mxu0 0
      %414 = vmatmul.mubr.bf16.gmra.mrb[0].mxu0 %v283
      %v415 = vpop.f32.mrb[0].mxu0
      %v416 = vadd.f32 0.0, %v415
      %v417 = vpop.f32.mrb[0].mxu0
      %v418 = vpop.f32.mrb[0].mxu0
      %v419 = vadd.f32 0.0, %v418
      %v420 = vpop.f32.mrb[0].mxu0
      %421 = vmatprep.mubr.bf16.mxu0 0
      %422 = vmatmul.mubr.bf16.gmra.mrb[0].mxu0 %v286
      %v423 = vpop.f32.mrb[0].mxu0
      %v424 = vadd.f32 0.0, %v423
      %v425 = vpop.f32.mrb[0].mxu0
      %v426 = vpop.f32.mrb[0].mxu0
      %v427 = vadd.f32 0.0, %v426
      %v428 = vpop.f32.mrb[0].mxu0
      %429 = vmatprep.mubr.bf16.mxu0 0
      %430 = vmatmul.mubr.bf16.gmra.mrb[0].mxu0 %v289
      %v431 = vpop.f32.mrb[0].mxu0
      %v432 = vadd.f32 0.0, %v431
      %v433 = vpop.f32.mrb[0].mxu0
      %v434 = vpop.f32.mrb[0].mxu0
      %v435 = vadd.f32 0.0, %v434
      %v436 = vpop.f32.mrb[0].mxu0
      %437 = vdwg.mxu0
      %v438 = vrot.slane %v408, 1
      %v439 = vrot.slane %v411, 1
      %v440 = vrot.slane %v416, 1
      %v441 = vrot.slane %v419, 1
      %v442 = vrot.slane %v424, 1
      %v443 = vrot.slane %v427, 1
      %v444 = vrot.slane %v432, 1
      %v445 = vrot.slane %v435, 1
      %v446 = vlaneseq
      %v447 = vshrl.u32 %v446, 7
      %vm448 = vcmp.lt.s32.totalorder %v447, 7
      %v449 = vsel %vm448, %v444, %v445
      %v450 = vsel %vm448, %v443, %v444
      %v451 = vsel %vm448, %v442, %v443
      %v452 = vsel %vm448, %v441, %v442
      %v453 = vsel %vm448, %v440, %v441
      %v454 = vsel %vm448, %v439, %v440
      %v455 = vsel %vm448, %v438, %v439
      %v456 = vsel %vm448, %v445, %v438
      %v457 = vadd.f32 %v326, %v455
      %v458 = vadd.f32 %v329, %v454
      %v459 = vadd.f32 %v334, %v453
      %v460 = vadd.f32 %v337, %v452
      %v461 = vadd.f32 %v342, %v451
      %v462 = vadd.f32 %v345, %v450
      %v463 = vadd.f32 %v350, %v449
      %v464 = vadd.f32 %v353, %v456
      %v465 = vmax.f32 %v457, 0.0
      %v466 = vmax.f32 %v458, 0.0
      %v467 = vmax.f32 %v459, 0.0
      %v468 = vmax.f32 %v460, 0.0
      %v469 = vmax.f32 %v461, 0.0
      %v470 = vmax.f32 %v462, 0.0
      %v471 = vmax.f32 %v463, 0.0
      %v472 = vmax.f32 %v464, 0.0
      %vm473 = vcmp.le.s32.totalorder %v447, 6
      %v474 = vsel %vm473, 1, 0
      %vm475 = vcmp.eq.s32.totalorder %v474, 1
      %v476 = vsel %vm475, %v465, 0.0
      %v477 = vsel %vm475, %v466, 0.0
      %v478 = vsel %vm475, %v467, 0.0
      %v479 = vsel %vm475, %v468, 0.0
      %v480 = vsel %vm475, %v469, 0.0
      %v481 = vsel %vm475, %v470, 0.0
      %v482 = vsel %vm475, %v471, 0.0
      %v483 = vsel %vm475, %v472, 0.0
      %vm484 = vcmask 130048
      %v485 = vsel %vm484, %v476, -inf
      %v486 = vrot.slane %v485, 4
      %v487 = vmax.f32 %v485, %v486
      %v488 = vrot.slane %v487, 2
      %v489 = vmax.f32 %v487, %v488
      %v490 = vrot.slane %v489, 1
      %v491 = vmax.f32 %v489, %v490
      %v492 = vsel %vm484, %v477, -inf
      %v493 = vrot.slane %v492, 4
      %v494 = vmax.f32 %v492, %v493
      %v495 = vrot.slane %v494, 2
      %v496 = vmax.f32 %v494, %v495
      %v497 = vrot.slane %v496, 1
      %v498 = vmax.f32 %v496, %v497
      %v499 = vsel %vm484, %v478, -inf
      %v500 = vrot.slane %v499, 4
      %v501 = vmax.f32 %v499, %v500
      %v502 = vrot.slane %v501, 2
      %v503 = vmax.f32 %v501, %v502
      %v504 = vrot.slane %v503, 1
      %v505 = vmax.f32 %v503, %v504
      %v506 = vsel %vm484, %v479, -inf
      %v507 = vrot.slane %v506, 4
      %v508 = vmax.f32 %v506, %v507
      %v509 = vrot.slane %v508, 2
      %v510 = vmax.f32 %v508, %v509
      %v511 = vrot.slane %v510, 1
      %v512 = vmax.f32 %v510, %v511
      %v513 = vsel %vm484, %v480, -inf
      %v514 = vrot.slane %v513, 4
      %v515 = vmax.f32 %v513, %v514
      %v516 = vrot.slane %v515, 2
      %v517 = vmax.f32 %v515, %v516
      %v518 = vrot.slane %v517, 1
      %v519 = vmax.f32 %v517, %v518
      %v520 = vsel %vm484, %v481, -inf
      %v521 = vrot.slane %v520, 4
      %v522 = vmax.f32 %v520, %v521
      %v523 = vrot.slane %v522, 2
      %v524 = vmax.f32 %v522, %v523
      %v525 = vrot.slane %v524, 1
      %v526 = vmax.f32 %v524, %v525
      %v527 = vsel %vm484, %v482, -inf
      %v528 = vrot.slane %v527, 4
      %v529 = vmax.f32 %v527, %v528
      %v530 = vrot.slane %v529, 2
      %v531 = vmax.f32 %v529, %v530
      %v532 = vrot.slane %v531, 1
      %v533 = vmax.f32 %v531, %v532
      %v534 = vsel %vm484, %v483, -inf
      %v535 = vrot.slane %v534, 4
      %v536 = vmax.f32 %v534, %v535
      %v537 = vrot.slane %v536, 2
      %v538 = vmax.f32 %v536, %v537
      %v539 = vrot.slane %v538, 1
      %v540 = vmax.f32 %v538, %v539
      %541 = vrot.lane.b32.xlu0 %v274, 112
      %v542 = vpop.permute.xlu0 %541
      %543 = vrot.lane.b32.xlu0 %v275, 112
      %v544 = vpop.permute.xlu0 %543
      %547 = vrot.lane.b32.xlu0 %v244, 112
      %v548 = vpop.permute.xlu0 %547
      %550 = vmatprep.subr.bf16.mxu0 0
      %551 = vmatpush1.bf16.msra.mxu0 %v542
      %552 = vmatprep.subr.bf16.mxu0 0
      %553 = vmatpush1.bf16.msra.mxu0 %v544
      %554 = vmatprep.subr.bf16.mxu0 0
      %555 = vmatpush1.bf16.msra.mxu0 0
      %556 = vmatprep.subr.bf16.mxu0 0
      %557 = vmatpush1.bf16.msra.mxu0 0
      %558 = vmatprep.subr.bf16.mxu0 0
      %559 = vmatpush1.bf16.msra.mxu0 0
      %560 = vmatprep.subr.bf16.mxu0 0
      %561 = vmatpush1.bf16.msra.mxu0 0
      %562 = vmatprep.subr.bf16.mxu0 0
      %563 = vmatpush1.bf16.msra.mxu0 0
      %564 = vmatprep.subr.bf16.mxu0 0
      %565 = vmatpush1.bf16.msra.mxu0 0
      %566 = vmatprep.subr.bf16.mxu0 0
      %567 = vmatpush1.bf16.msra.mxu0 0
      %568 = vmatprep.subr.bf16.mxu0 0
      %569 = vmatpush1.bf16.msra.mxu0 0
      %570 = vmatprep.subr.bf16.mxu0 0
      %571 = vmatpush1.bf16.msra.mxu0 0
      %572 = vmatprep.subr.bf16.mxu0 0
      %573 = vmatpush1.bf16.msra.mxu0 0
      %574 = vmatprep.subr.bf16.mxu0 0
      %575 = vmatpush1.bf16.msra.mxu0 0
      %576 = vmatprep.subr.bf16.mxu0 0
      %577 = vmatpush1.bf16.msra.mxu0 0
      %578 = vmatprep.subr.bf16.mxu0 0
      %579 = vmatpush1.bf16.msra.mxu0 0
      %580 = vmatprep.subr.bf16.mxu0 0
      %581 = vmatpush1.bf16.msra.mxu0 0
      %582 = vmatprep.mubr.bf16.mxu0 0
      %583 = vmatmul.mubr.bf16.gmra.mrb[0].mxu0 %v280
      %v584 = vpop.f32.mrb[0].mxu0
      %v585 = vadd.f32 %v548, %v584
      %v586 = vpop.f32.mrb[0].mxu0
      %v587 = vpop.f32.mrb[0].mxu0
      %v588 = vadd.f32 %v548, %v587
      %v589 = vpop.f32.mrb[0].mxu0
      %590 = vmatprep.mubr.bf16.mxu0 0
      %591 = vmatmul.mubr.bf16.gmra.mrb[0].mxu0 %v283
      %v592 = vpop.f32.mrb[0].mxu0
      %v593 = vadd.f32 %v548, %v592
      %v594 = vpop.f32.mrb[0].mxu0
      %v595 = vpop.f32.mrb[0].mxu0
      %v596 = vadd.f32 %v548, %v595
      %v597 = vpop.f32.mrb[0].mxu0
      %598 = vmatprep.mubr.bf16.mxu0 0
      %599 = vmatmul.mubr.bf16.gmra.mrb[0].mxu0 %v286
      %v600 = vpop.f32.mrb[0].mxu0
      %v601 = vadd.f32 %v548, %v600
      %v602 = vpop.f32.mrb[0].mxu0
      %v603 = vpop.f32.mrb[0].mxu0
      %v604 = vadd.f32 %v548, %v603
      %v605 = vpop.f32.mrb[0].mxu0
      %606 = vmatprep.mubr.bf16.mxu0 0
      %607 = vmatmul.mubr.bf16.gmra.mrb[0].mxu0 %v289
      %v608 = vpop.f32.mrb[0].mxu0
      %v609 = vadd.f32 %v548, %v608
      %v610 = vpop.f32.mrb[0].mxu0
      %v611 = vpop.f32.mrb[0].mxu0
      %v612 = vadd.f32 %v548, %v611
      %v613 = vpop.f32.mrb[0].mxu0
      %614 = vdwg.mxu0
      %615 = vrot.lane.b32.xlu0 %v369, 112
      %v616 = vpop.permute.xlu0 %615
      %617 = vrot.lane.b32.xlu0 %v370, 112
      %v618 = vpop.permute.xlu0 %617
      %621 = vmatprep.subr.bf16.mxu0 0
      %622 = vmatpush1.bf16.msra.mxu0 %v616
      %623 = vmatprep.subr.bf16.mxu0 0
      %624 = vmatpush1.bf16.msra.mxu0 %v618
      %625 = vmatprep.subr.bf16.mxu0 0
      %626 = vmatpush1.bf16.msra.mxu0 0
      %627 = vmatprep.subr.bf16.mxu0 0
      %628 = vmatpush1.bf16.msra.mxu0 0
      %629 = vmatprep.subr.bf16.mxu0 0
      %630 = vmatpush1.bf16.msra.mxu0 0
      %631 = vmatprep.subr.bf16.mxu0 0
      %632 = vmatpush1.bf16.msra.mxu0 0
      %633 = vmatprep.subr.bf16.mxu0 0
      %634 = vmatpush1.bf16.msra.mxu0 0
      %635 = vmatprep.subr.bf16.mxu0 0
      %636 = vmatpush1.bf16.msra.mxu0 0
      %637 = vmatprep.subr.bf16.mxu0 0
      %638 = vmatpush1.bf16.msra.mxu0 0
      %639 = vmatprep.subr.bf16.mxu0 0
      %640 = vmatpush1.bf16.msra.mxu0 0
      %641 = vmatprep.subr.bf16.mxu0 0
      %642 = vmatpush1.bf16.msra.mxu0 0
      %643 = vmatprep.subr.bf16.mxu0 0
      %644 = vmatpush1.bf16.msra.mxu0 0
      %645 = vmatprep.subr.bf16.mxu0 0
      %646 = vmatpush1.bf16.msra.mxu0 0
      %647 = vmatprep.subr.bf16.mxu0 0
      %648 = vmatpush1.bf16.msra.mxu0 0
      %649 = vmatprep.subr.bf16.mxu0 0
      %650 = vmatpush1.bf16.msra.mxu0 0
      %651 = vmatprep.subr.bf16.mxu0 0
      %652 = vmatpush1.bf16.msra.mxu0 0
      %653 = vmatprep.mubr.bf16.mxu0 0
      %654 = vmatmul.mubr.bf16.gmra.mrb[0].mxu0 %v280
      %v655 = vpop.f32.mrb[0].mxu0
      %v656 = vadd.f32 0.0, %v655
      %v657 = vpop.f32.mrb[0].mxu0
      %v658 = vpop.f32.mrb[0].mxu0
      %v659 = vadd.f32 0.0, %v658
      %v660 = vpop.f32.mrb[0].mxu0
      %661 = vmatprep.mubr.bf16.mxu0 0
      %662 = vmatmul.mubr.bf16.gmra.mrb[0].mxu0 %v283
      %v663 = vpop.f32.mrb[0].mxu0
      %v664 = vadd.f32 0.0, %v663
      %v665 = vpop.f32.mrb[0].mxu0
      %v666 = vpop.f32.mrb[0].mxu0
      %v667 = vadd.f32 0.0, %v666
      %v668 = vpop.f32.mrb[0].mxu0
      %669 = vmatprep.mubr.bf16.mxu0 0
      %670 = vmatmul.mubr.bf16.gmra.mrb[0].mxu0 %v286
      %v671 = vpop.f32.mrb[0].mxu0
      %v672 = vadd.f32 0.0, %v671
      %v673 = vpop.f32.mrb[0].mxu0
      %v674 = vpop.f32.mrb[0].mxu0
      %v675 = vadd.f32 0.0, %v674
      %v676 = vpop.f32.mrb[0].mxu0
      %677 = vmatprep.mubr.bf16.mxu0 0
      %678 = vmatmul.mubr.bf16.gmra.mrb[0].mxu0 %v289
      %v679 = vpop.f32.mrb[0].mxu0
      %v680 = vadd.f32 0.0, %v679
      %v681 = vpop.f32.mrb[0].mxu0
      %v682 = vpop.f32.mrb[0].mxu0
      %v683 = vadd.f32 0.0, %v682
      %v684 = vpop.f32.mrb[0].mxu0
      %685 = vdwg.mxu0
      %v686 = vrot.slane %v656, 1
      %v687 = vrot.slane %v659, 1
      %v688 = vrot.slane %v664, 1
      %v689 = vrot.slane %v667, 1
      %v690 = vrot.slane %v672, 1
      %v691 = vrot.slane %v675, 1
      %v692 = vrot.slane %v680, 1
      %v693 = vrot.slane %v683, 1
      %v694 = vsel %vm448, %v692, %v693
      %v695 = vsel %vm448, %v691, %v692
      %v696 = vsel %vm448, %v690, %v691
      %v697 = vsel %vm448, %v689, %v690
      %v698 = vsel %vm448, %v688, %v689
      %v699 = vsel %vm448, %v687, %v688
      %v700 = vsel %vm448, %v686, %v687
      %v701 = vsel %vm448, %v693, %v686
      %v702 = vadd.f32 %v585, %v700
      %v703 = vadd.f32 %v588, %v699
      %v704 = vadd.f32 %v593, %v698
      %v705 = vadd.f32 %v596, %v697
      %v706 = vadd.f32 %v601, %v696
      %v707 = vadd.f32 %v604, %v695
      %v708 = vadd.f32 %v609, %v694
      %v709 = vadd.f32 %v612, %v701
      %s710 = scalar_lea.vmem %s1, 32
      %v711 = vld [vmem:[%s710] sm:$0xf]
      %v712 = vld [vmem:[%s710 + $0x4] sm:$0xf]
      %v713 = vld [vmem:[%s710 + $0x8] sm:$0xf]
      %v714 = vld [vmem:[%s710 + $0xc] sm:$0xf]
      %v719 = vunpack.c.l.b16 %v711
      %v720 = vunpack.c.l.b16 %v712
      %v721 = vunpack.c.l.b16 %v713
      %v722 = vunpack.c.l.b16 %v714
      %v723 = vpack.c.b16 %v720, %v719
      %v724 = vpack.c.b16 %v722, %v721
      %725 = vrot.lane.b32.xlu0 %v723, 112
      %v726 = vpop.permute.xlu0 %725
      %727 = vrot.lane.b32.xlu0 %v724, 112
      %v728 = vpop.permute.xlu0 %727
      %731 = vmatprep.subr.bf16.mxu0 0
      %732 = vmatpush1.bf16.msra.mxu0 %v726
      %733 = vmatprep.subr.bf16.mxu0 0
      %734 = vmatpush1.bf16.msra.mxu0 %v728
      %735 = vmatprep.subr.bf16.mxu0 0
      %736 = vmatpush1.bf16.msra.mxu0 0
      %737 = vmatprep.subr.bf16.mxu0 0
      %738 = vmatpush1.bf16.msra.mxu0 0
      %739 = vmatprep.subr.bf16.mxu0 0
      %740 = vmatpush1.bf16.msra.mxu0 0
      %741 = vmatprep.subr.bf16.mxu0 0
      %742 = vmatpush1.bf16.msra.mxu0 0
      %743 = vmatprep.subr.bf16.mxu0 0
      %744 = vmatpush1.bf16.msra.mxu0 0
      %745 = vmatprep.subr.bf16.mxu0 0
      %746 = vmatpush1.bf16.msra.mxu0 0
      %747 = vmatprep.subr.bf16.mxu0 0
      %748 = vmatpush1.bf16.msra.mxu0 0
      %749 = vmatprep.subr.bf16.mxu0 0
      %750 = vmatpush1.bf16.msra.mxu0 0
      %751 = vmatprep.subr.bf16.mxu0 0
      %752 = vmatpush1.bf16.msra.mxu0 0
      %753 = vmatprep.subr.bf16.mxu0 0
      %754 = vmatpush1.bf16.msra.mxu0 0
      %755 = vmatprep.subr.bf16.mxu0 0
      %756 = vmatpush1.bf16.msra.mxu0 0
      %757 = vmatprep.subr.bf16.mxu0 0
      %758 = vmatpush1.bf16.msra.mxu0 0
      %759 = vmatprep.subr.bf16.mxu0 0
      %760 = vmatpush1.bf16.msra.mxu0 0
      %761 = vmatprep.subr.bf16.mxu0 0
      %762 = vmatpush1.bf16.msra.mxu0 0
      %763 = vmatprep.mubr.bf16.mxu0 0
      %764 = vmatmul.mubr.bf16.gmra.mrb[0].mxu0 %v280
      %v765 = vpop.f32.mrb[0].mxu0
      %v766 = vadd.f32 0.0, %v765
      %v767 = vpop.f32.mrb[0].mxu0
      %v768 = vpop.f32.mrb[0].mxu0
      %v769 = vadd.f32 0.0, %v768
      %v770 = vpop.f32.mrb[0].mxu0
      %771 = vmatprep.mubr.bf16.mxu0 0
      %772 = vmatmul.mubr.bf16.gmra.mrb[0].mxu0 %v283
      %v773 = vpop.f32.mrb[0].mxu0
      %v774 = vadd.f32 0.0, %v773
      %v775 = vpop.f32.mrb[0].mxu0
      %v776 = vpop.f32.mrb[0].mxu0
      %v777 = vadd.f32 0.0, %v776
      %v778 = vpop.f32.mrb[0].mxu0
      %779 = vmatprep.mubr.bf16.mxu0 0
      %780 = vmatmul.mubr.bf16.gmra.mrb[0].mxu0 %v286
      %v781 = vpop.f32.mrb[0].mxu0
      %v782 = vadd.f32 0.0, %v781
      %v783 = vpop.f32.mrb[0].mxu0
      %v784 = vpop.f32.mrb[0].mxu0
      %v785 = vadd.f32 0.0, %v784
      %v786 = vpop.f32.mrb[0].mxu0
      %787 = vmatprep.mubr.bf16.mxu0 0
      %788 = vmatmul.mubr.bf16.gmra.mrb[0].mxu0 %v289
      %v789 = vpop.f32.mrb[0].mxu0
      %v790 = vadd.f32 0.0, %v789
      %v791 = vpop.f32.mrb[0].mxu0
      %v792 = vpop.f32.mrb[0].mxu0
      %v793 = vadd.f32 0.0, %v792
      %v794 = vpop.f32.mrb[0].mxu0
      %795 = vdwg.mxu0
      %v796 = vrot.slane %v766, 2
      %v797 = vrot.slane %v769, 2
      %v798 = vrot.slane %v774, 2
      %v799 = vrot.slane %v777, 2
      %v800 = vrot.slane %v782, 2
      %v801 = vrot.slane %v785, 2
      %v802 = vrot.slane %v790, 2
      %v803 = vrot.slane %v793, 2
      %vm804 = vcmp.lt.s32.totalorder %v447, 6
      %v805 = vsel %vm804, %v802, %v803
      %v806 = vsel %vm804, %v801, %v802
      %v807 = vsel %vm804, %v800, %v801
      %v808 = vsel %vm804, %v799, %v800
      %v809 = vsel %vm804, %v798, %v799
      %v810 = vsel %vm804, %v797, %v798
      %v811 = vsel %vm804, %v796, %v797
      %v812 = vsel %vm804, %v803, %v796
      %v813 = vadd.f32 %v702, %v811
      %v814 = vadd.f32 %v703, %v810
      %v815 = vadd.f32 %v704, %v809
      %v816 = vadd.f32 %v705, %v808
      %v817 = vadd.f32 %v706, %v807
      %v818 = vadd.f32 %v707, %v806
      %v819 = vadd.f32 %v708, %v805
      %v820 = vadd.f32 %v709, %v812
      %v821 = vmax.f32 %v813, 0.0
      %v822 = vmax.f32 %v814, 0.0
      %v823 = vmax.f32 %v815, 0.0
      %v824 = vmax.f32 %v816, 0.0
      %v825 = vmax.f32 %v817, 0.0
      %v826 = vmax.f32 %v818, 0.0
      %v827 = vmax.f32 %v819, 0.0
      %v828 = vmax.f32 %v820, 0.0
      %vm829 = vcmp.le.s32.totalorder %v447, 5
      %v830 = vsel %vm829, 1, 0
      %vm831 = vcmp.eq.s32.totalorder %v830, 1
      %v832 = vsel %vm831, %v821, 0.0
      %v833 = vsel %vm831, %v822, 0.0
      %v834 = vsel %vm831, %v823, 0.0
      %v835 = vsel %vm831, %v824, 0.0
      %v836 = vsel %vm831, %v825, 0.0
      %v837 = vsel %vm831, %v826, 0.0
      %v838 = vsel %vm831, %v827, 0.0
      %v839 = vsel %vm831, %v828, 0.0
      %v840 = vsel %vm484, %v832, -inf
      %v841 = vrot.slane %v840, 4
      %v842 = vmax.f32 %v840, %v841
      %v843 = vrot.slane %v842, 2
      %v844 = vmax.f32 %v842, %v843
      %v845 = vrot.slane %v844, 1
      %v846 = vmax.f32 %v844, %v845
      %v847 = vsel %vm484, %v833, -inf
      %v848 = vrot.slane %v847, 4
      %v849 = vmax.f32 %v847, %v848
      %v850 = vrot.slane %v849, 2
      %v851 = vmax.f32 %v849, %v850
      %v852 = vrot.slane %v851, 1
      %v853 = vmax.f32 %v851, %v852
      %v854 = vsel %vm484, %v834, -inf
      %v855 = vrot.slane %v854, 4
      %v856 = vmax.f32 %v854, %v855
      %v857 = vrot.slane %v856, 2
      %v858 = vmax.f32 %v856, %v857
      %v859 = vrot.slane %v858, 1
      %v860 = vmax.f32 %v858, %v859
      %v861 = vsel %vm484, %v835, -inf
      %v862 = vrot.slane %v861, 4
      %v863 = vmax.f32 %v861, %v862
      %v864 = vrot.slane %v863, 2
      %v865 = vmax.f32 %v863, %v864
      %v866 = vrot.slane %v865, 1
      %v867 = vmax.f32 %v865, %v866
      %v868 = vsel %vm484, %v836, -inf
      %v869 = vrot.slane %v868, 4
      %v870 = vmax.f32 %v868, %v869
      %v871 = vrot.slane %v870, 2
      %v872 = vmax.f32 %v870, %v871
      %v873 = vrot.slane %v872, 1
      %v874 = vmax.f32 %v872, %v873
      %v875 = vsel %vm484, %v837, -inf
      %v876 = vrot.slane %v875, 4
      %v877 = vmax.f32 %v875, %v876
      %v878 = vrot.slane %v877, 2
      %v879 = vmax.f32 %v877, %v878
      %v880 = vrot.slane %v879, 1
      %v881 = vmax.f32 %v879, %v880
      %v882 = vsel %vm484, %v838, -inf
      %v883 = vrot.slane %v882, 4
      %v884 = vmax.f32 %v882, %v883
      %v885 = vrot.slane %v884, 2
      %v886 = vmax.f32 %v884, %v885
      %v887 = vrot.slane %v886, 1
      %v888 = vmax.f32 %v886, %v887
      %v889 = vsel %vm484, %v839, -inf
      %v890 = vrot.slane %v889, 4
      %v891 = vmax.f32 %v889, %v890
      %v892 = vrot.slane %v891, 2
      %v893 = vmax.f32 %v891, %v892
      %v894 = vrot.slane %v893, 1
      %v895 = vmax.f32 %v893, %v894
      %896 = vrot.lane.b32.xlu0 %v274, 96
      %v897 = vpop.permute.xlu0 %896
      %898 = vrot.lane.b32.xlu0 %v275, 96
      %v899 = vpop.permute.xlu0 %898
      %902 = vrot.lane.b32.xlu0 %v244, 96
      %v903 = vpop.permute.xlu0 %902
      %905 = vmatprep.subr.bf16.mxu0 0
      %906 = vmatpush1.bf16.msra.mxu0 %v897
      %907 = vmatprep.subr.bf16.mxu0 0
      %908 = vmatpush1.bf16.msra.mxu0 %v899
      %909 = vmatprep.subr.bf16.mxu0 0
      %910 = vmatpush1.bf16.msra.mxu0 0
      %911 = vmatprep.subr.bf16.mxu0 0
      %912 = vmatpush1.bf16.msra.mxu0 0
      %913 = vmatprep.subr.bf16.mxu0 0
      %914 = vmatpush1.bf16.msra.mxu0 0
      %915 = vmatprep.subr.bf16.mxu0 0
      %916 = vmatpush1.bf16.msra.mxu0 0
      %917 = vmatprep.subr.bf16.mxu0 0
      %918 = vmatpush1.bf16.msra.mxu0 0
      %919 = vmatprep.subr.bf16.mxu0 0
      %920 = vmatpush1.bf16.msra.mxu0 0
      %921 = vmatprep.subr.bf16.mxu0 0
      %922 = vmatpush1.bf16.msra.mxu0 0
      %923 = vmatprep.subr.bf16.mxu0 0
      %924 = vmatpush1.bf16.msra.mxu0 0
      %925 = vmatprep.subr.bf16.mxu0 0
      %926 = vmatpush1.bf16.msra.mxu0 0
      %927 = vmatprep.subr.bf16.mxu0 0
      %928 = vmatpush1.bf16.msra.mxu0 0
      %929 = vmatprep.subr.bf16.mxu0 0
      %930 = vmatpush1.bf16.msra.mxu0 0
      %931 = vmatprep.subr.bf16.mxu0 0
      %932 = vmatpush1.bf16.msra.mxu0 0
      %933 = vmatprep.subr.bf16.mxu0 0
      %934 = vmatpush1.bf16.msra.mxu0 0
      %935 = vmatprep.subr.bf16.mxu0 0
      %936 = vmatpush1.bf16.msra.mxu0 0
      %937 = vmatprep.mubr.bf16.mxu0 0
      %938 = vmatmul.mubr.bf16.gmra.mrb[0].mxu0 %v280
      %v939 = vpop.f32.mrb[0].mxu0
      %v940 = vadd.f32 %v903, %v939
      %v941 = vpop.f32.mrb[0].mxu0
      %v942 = vpop.f32.mrb[0].mxu0
      %v943 = vadd.f32 %v903, %v942
      %v944 = vpop.f32.mrb[0].mxu0
      %945 = vmatprep.mubr.bf16.mxu0 0
      %946 = vmatmul.mubr.bf16.gmra.mrb[0].mxu0 %v283
      %v947 = vpop.f32.mrb[0].mxu0
      %v948 = vadd.f32 %v903, %v947
      %v949 = vpop.f32.mrb[0].mxu0
      %v950 = vpop.f32.mrb[0].mxu0
      %v951 = vadd.f32 %v903, %v950
      %v952 = vpop.f32.mrb[0].mxu0
      %953 = vmatprep.mubr.bf16.mxu0 0
      %954 = vmatmul.mubr.bf16.gmra.mrb[0].mxu0 %v286
      %v955 = vpop.f32.mrb[0].mxu0
      %v956 = vadd.f32 %v903, %v955
      %v957 = vpop.f32.mrb[0].mxu0
      %v958 = vpop.f32.mrb[0].mxu0
      %v959 = vadd.f32 %v903, %v958
      %v960 = vpop.f32.mrb[0].mxu0
      %961 = vmatprep.mubr.bf16.mxu0 0
      %962 = vmatmul.mubr.bf16.gmra.mrb[0].mxu0 %v289
      %v963 = vpop.f32.mrb[0].mxu0
      %v964 = vadd.f32 %v903, %v963
      %v965 = vpop.f32.mrb[0].mxu0
      %v966 = vpop.f32.mrb[0].mxu0
      %v967 = vadd.f32 %v903, %v966
      %v968 = vpop.f32.mrb[0].mxu0
      %969 = vdwg.mxu0
      %970 = vrot.lane.b32.xlu0 %v369, 96
      %v971 = vpop.permute.xlu0 %970
      %972 = vrot.lane.b32.xlu0 %v370, 96
      %v973 = vpop.permute.xlu0 %972
      %976 = vmatprep.subr.bf16.mxu0 0
      %977 = vmatpush1.bf16.msra.mxu0 %v971
      %978 = vmatprep.subr.bf16.mxu0 0
      %979 = vmatpush1.bf16.msra.mxu0 %v973
      %980 = vmatprep.subr.bf16.mxu0 0
      %981 = vmatpush1.bf16.msra.mxu0 0
      %982 = vmatprep.subr.bf16.mxu0 0
      %983 = vmatpush1.bf16.msra.mxu0 0
      %984 = vmatprep.subr.bf16.mxu0 0
      %985 = vmatpush1.bf16.msra.mxu0 0
      %986 = vmatprep.subr.bf16.mxu0 0
      %987 = vmatpush1.bf16.msra.mxu0 0
      %988 = vmatprep.subr.bf16.mxu0 0
      %989 = vmatpush1.bf16.msra.mxu0 0
      %990 = vmatprep.subr.bf16.mxu0 0
      %991 = vmatpush1.bf16.msra.mxu0 0
      %992 = vmatprep.subr.bf16.mxu0 0
      %993 = vmatpush1.bf16.msra.mxu0 0
      %994 = vmatprep.subr.bf16.mxu0 0
      %995 = vmatpush1.bf16.msra.mxu0 0
      %996 = vmatprep.subr.bf16.mxu0 0
      %997 = vmatpush1.bf16.msra.mxu0 0
      %998 = vmatprep.subr.bf16.mxu0 0
      %999 = vmatpush1.bf16.msra.mxu0 0
      %1000 = vmatprep.subr.bf16.mxu0 0
      %1001 = vmatpush1.bf16.msra.mxu0 0
      %1002 = vmatprep.subr.bf16.mxu0 0
      %1003 = vmatpush1.bf16.msra.mxu0 0
      %1004 = vmatprep.subr.bf16.mxu0 0
      %1005 = vmatpush1.bf16.msra.mxu0 0
      %1006 = vmatprep.subr.bf16.mxu0 0
      %1007 = vmatpush1.bf16.msra.mxu0 0
      %1008 = vmatprep.mubr.bf16.mxu0 0
      %1009 = vmatmul.mubr.bf16.gmra.mrb[0].mxu0 %v280
      %v1010 = vpop.f32.mrb[0].mxu0
      %v1011 = vadd.f32 0.0, %v1010
      %v1012 = vpop.f32.mrb[0].mxu0
      %v1013 = vpop.f32.mrb[0].mxu0
      %v1014 = vadd.f32 0.0, %v1013
      %v1015 = vpop.f32.mrb[0].mxu0
      %1016 = vmatprep.mubr.bf16.mxu0 0
      %1017 = vmatmul.mubr.bf16.gmra.mrb[0].mxu0 %v283
      %v1018 = vpop.f32.mrb[0].mxu0
      %v1019 = vadd.f32 0.0, %v1018
      %v1020 = vpop.f32.mrb[0].mxu0
      %v1021 = vpop.f32.mrb[0].mxu0
      %v1022 = vadd.f32 0.0, %v1021
      %v1023 = vpop.f32.mrb[0].mxu0
      %1024 = vmatprep.mubr.bf16.mxu0 0
      %1025 = vmatmul.mubr.bf16.gmra.mrb[0].mxu0 %v286
      %v1026 = vpop.f32.mrb[0].mxu0
      %v1027 = vadd.f32 0.0, %v1026
      %v1028 = vpop.f32.mrb[0].mxu0
      %v1029 = vpop.f32.mrb[0].mxu0
      %v1030 = vadd.f32 0.0, %v1029
      %v1031 = vpop.f32.mrb[0].mxu0
      %1032 = vmatprep.mubr.bf16.mxu0 0
      %1033 = vmatmul.mubr.bf16.gmra.mrb[0].mxu0 %v289
      %v1034 = vpop.f32.mrb[0].mxu0
      %v1035 = vadd.f32 0.0, %v1034
      %v1036 = vpop.f32.mrb[0].mxu0
      %v1037 = vpop.f32.mrb[0].mxu0
      %v1038 = vadd.f32 0.0, %v1037
      %v1039 = vpop.f32.mrb[0].mxu0
      %1040 = vdwg.mxu0
      %v1041 = vrot.slane %v1011, 1
      %v1042 = vrot.slane %v1014, 1
      %v1043 = vrot.slane %v1019, 1
      %v1044 = vrot.slane %v1022, 1
      %v1045 = vrot.slane %v1027, 1
      %v1046 = vrot.slane %v1030, 1
      %v1047 = vrot.slane %v1035, 1
      %v1048 = vrot.slane %v1038, 1
      %v1049 = vsel %vm448, %v1047, %v1048
      %v1050 = vsel %vm448, %v1046, %v1047
      %v1051 = vsel %vm448, %v1045, %v1046
      %v1052 = vsel %vm448, %v1044, %v1045
      %v1053 = vsel %vm448, %v1043, %v1044
      %v1054 = vsel %vm448, %v1042, %v1043
      %v1055 = vsel %vm448, %v1041, %v1042
      %v1056 = vsel %vm448, %v1048, %v1041
      %v1057 = vadd.f32 %v940, %v1055
      %v1058 = vadd.f32 %v943, %v1054
      %v1059 = vadd.f32 %v948, %v1053
      %v1060 = vadd.f32 %v951, %v1052
      %v1061 = vadd.f32 %v956, %v1051
      %v1062 = vadd.f32 %v959, %v1050
      %v1063 = vadd.f32 %v964, %v1049
      %v1064 = vadd.f32 %v967, %v1056
      %1065 = vrot.lane.b32.xlu0 %v723, 96
      %v1066 = vpop.permute.xlu0 %1065
      %1067 = vrot.lane.b32.xlu0 %v724, 96
      %v1068 = vpop.permute.xlu0 %1067
      %1071 = vmatprep.subr.bf16.mxu0 0
      %1072 = vmatpush1.bf16.msra.mxu0 %v1066
      %1073 = vmatprep.subr.bf16.mxu0 0
      %1074 = vmatpush1.bf16.msra.mxu0 %v1068
      %1075 = vmatprep.subr.bf16.mxu0 0
      %1076 = vmatpush1.bf16.msra.mxu0 0
      %1077 = vmatprep.subr.bf16.mxu0 0
      %1078 = vmatpush1.bf16.msra.mxu0 0
      %1079 = vmatprep.subr.bf16.mxu0 0
      %1080 = vmatpush1.bf16.msra.mxu0 0
      %1081 = vmatprep.subr.bf16.mxu0 0
      %1082 = vmatpush1.bf16.msra.mxu0 0
      %1083 = vmatprep.subr.bf16.mxu0 0
      %1084 = vmatpush1.bf16.msra.mxu0 0
      %1085 = vmatprep.subr.bf16.mxu0 0
      %1086 = vmatpush1.bf16.msra.mxu0 0
      %1087 = vmatprep.subr.bf16.mxu0 0
      %1088 = vmatpush1.bf16.msra.mxu0 0
      %1089 = vmatprep.subr.bf16.mxu0 0
      %1090 = vmatpush1.bf16.msra.mxu0 0
      %1091 = vmatprep.subr.bf16.mxu0 0
      %1092 = vmatpush1.bf16.msra.mxu0 0
      %1093 = vmatprep.subr.bf16.mxu0 0
      %1094 = vmatpush1.bf16.msra.mxu0 0
      %1095 = vmatprep.subr.bf16.mxu0 0
      %1096 = vmatpush1.bf16.msra.mxu0 0
      %1097 = vmatprep.subr.bf16.mxu0 0
      %1098 = vmatpush1.bf16.msra.mxu0 0
      %1099 = vmatprep.subr.bf16.mxu0 0
      %1100 = vmatpush1.bf16.msra.mxu0 0
      %1101 = vmatprep.subr.bf16.mxu0 0
      %1102 = vmatpush1.bf16.msra.mxu0 0
      %1103 = vmatprep.mubr.bf16.mxu0 0
      %1104 = vmatmul.mubr.bf16.gmra.mrb[0].mxu0 %v280
      %v1105 = vpop.f32.mrb[0].mxu0
      %v1106 = vadd.f32 0.0, %v1105
      %v1107 = vpop.f32.mrb[0].mxu0
      %v1108 = vpop.f32.mrb[0].mxu0
      %v1109 = vadd.f32 0.0, %v1108
      %v1110 = vpop.f32.mrb[0].mxu0
      %1111 = vmatprep.mubr.bf16.mxu0 0
      %1112 = vmatmul.mubr.bf16.gmra.mrb[0].mxu0 %v283
      %v1113 = vpop.f32.mrb[0].mxu0
      %v1114 = vadd.f32 0.0, %v1113
      %v1115 = vpop.f32.mrb[0].mxu0
      %v1116 = vpop.f32.mrb[0].mxu0
      %v1117 = vadd.f32 0.0, %v1116
      %v1118 = vpop.f32.mrb[0].mxu0
      %1119 = vmatprep.mubr.bf16.mxu0 0
      %1120 = vmatmul.mubr.bf16.gmra.mrb[0].mxu0 %v286
      %v1121 = vpop.f32.mrb[0].mxu0
      %v1122 = vadd.f32 0.0, %v1121
      %v1123 = vpop.f32.mrb[0].mxu0
      %v1124 = vpop.f32.mrb[0].mxu0
      %v1125 = vadd.f32 0.0, %v1124
      %v1126 = vpop.f32.mrb[0].mxu0
      %1127 = vmatprep.mubr.bf16.mxu0 0
      %1128 = vmatmul.mubr.bf16.gmra.mrb[0].mxu0 %v289
      %v1129 = vpop.f32.mrb[0].mxu0
      %v1130 = vadd.f32 0.0, %v1129
      %v1131 = vpop.f32.mrb[0].mxu0
      %v1132 = vpop.f32.mrb[0].mxu0
      %v1133 = vadd.f32 0.0, %v1132
      %v1134 = vpop.f32.mrb[0].mxu0
      %1135 = vdwg.mxu0
      %v1136 = vrot.slane %v1106, 2
      %v1137 = vrot.slane %v1109, 2
      %v1138 = vrot.slane %v1114, 2
      %v1139 = vrot.slane %v1117, 2
      %v1140 = vrot.slane %v1122, 2
      %v1141 = vrot.slane %v1125, 2
      %v1142 = vrot.slane %v1130, 2
      %v1143 = vrot.slane %v1133, 2
      %v1144 = vsel %vm804, %v1142, %v1143
      %v1145 = vsel %vm804, %v1141, %v1142
      %v1146 = vsel %vm804, %v1140, %v1141
      %v1147 = vsel %vm804, %v1139, %v1140
      %v1148 = vsel %vm804, %v1138, %v1139
      %v1149 = vsel %vm804, %v1137, %v1138
      %v1150 = vsel %vm804, %v1136, %v1137
      %v1151 = vsel %vm804, %v1143, %v1136
      %v1152 = vadd.f32 %v1057, %v1150
      %v1153 = vadd.f32 %v1058, %v1149
      %v1154 = vadd.f32 %v1059, %v1148
      %v1155 = vadd.f32 %v1060, %v1147
      %v1156 = vadd.f32 %v1061, %v1146
      %v1157 = vadd.f32 %v1062, %v1145
      %v1158 = vadd.f32 %v1063, %v1144
      %v1159 = vadd.f32 %v1064, %v1151
      %s1160 = scalar_lea.vmem %s1, 48
      %v1161 = vld [vmem:[%s1160] sm:$0xf]
      %v1162 = vld [vmem:[%s1160 + $0x4] sm:$0xf]
      %v1163 = vld [vmem:[%s1160 + $0x8] sm:$0xf]
      %v1164 = vld [vmem:[%s1160 + $0xc] sm:$0xf]
      %v1169 = vunpack.c.l.b16 %v1161
      %v1170 = vunpack.c.l.b16 %v1162
      %v1171 = vunpack.c.l.b16 %v1163
      %v1172 = vunpack.c.l.b16 %v1164
      %v1173 = vpack.c.b16 %v1170, %v1169
      %v1174 = vpack.c.b16 %v1172, %v1171
      %1175 = vrot.lane.b32.xlu0 %v1173, 96
      %v1176 = vpop.permute.xlu0 %1175
      %1177 = vrot.lane.b32.xlu0 %v1174, 96
      %v1178 = vpop.permute.xlu0 %1177
      %1181 = vmatprep.subr.bf16.mxu0 0
      %1182 = vmatpush1.bf16.msra.mxu0 %v1176
      %1183 = vmatprep.subr.bf16.mxu0 0
      %1184 = vmatpush1.bf16.msra.mxu0 %v1178
      %1185 = vmatprep.subr.bf16.mxu0 0
      %1186 = vmatpush1.bf16.msra.mxu0 0
      %1187 = vmatprep.subr.bf16.mxu0 0
      %1188 = vmatpush1.bf16.msra.mxu0 0
      %1189 = vmatprep.subr.bf16.mxu0 0
      %1190 = vmatpush1.bf16.msra.mxu0 0
      %1191 = vmatprep.subr.bf16.mxu0 0
      %1192 = vmatpush1.bf16.msra.mxu0 0
      %1193 = vmatprep.subr.bf16.mxu0 0
      %1194 = vmatpush1.bf16.msra.mxu0 0
      %1195 = vmatprep.subr.bf16.mxu0 0
      %1196 = vmatpush1.bf16.msra.mxu0 0
      %1197 = vmatprep.subr.bf16.mxu0 0
      %1198 = vmatpush1.bf16.msra.mxu0 0
      %1199 = vmatprep.subr.bf16.mxu0 0
      %1200 = vmatpush1.bf16.msra.mxu0 0
      %1201 = vmatprep.subr.bf16.mxu0 0
      %1202 = vmatpush1.bf16.msra.mxu0 0
      %1203 = vmatprep.subr.bf16.mxu0 0
      %1204 = vmatpush1.bf16.msra.mxu0 0
      %1205 = vmatprep.subr.bf16.mxu0 0
      %1206 = vmatpush1.bf16.msra.mxu0 0
      %1207 = vmatprep.subr.bf16.mxu0 0
      %1208 = vmatpush1.bf16.msra.mxu0 0
      %1209 = vmatprep.subr.bf16.mxu0 0
      %1210 = vmatpush1.bf16.msra.mxu0 0
      %1211 = vmatprep.subr.bf16.mxu0 0
      %1212 = vmatpush1.bf16.msra.mxu0 0
      %1213 = vmatprep.mubr.bf16.mxu0 0
      %1214 = vmatmul.mubr.bf16.gmra.mrb[0].mxu0 %v280
      %v1215 = vpop.f32.mrb[0].mxu0
      %v1216 = vadd.f32 0.0, %v1215
      %v1217 = vpop.f32.mrb[0].mxu0
      %v1218 = vpop.f32.mrb[0].mxu0
      %v1219 = vadd.f32 0.0, %v1218
      %v1220 = vpop.f32.mrb[0].mxu0
      %1221 = vmatprep.mubr.bf16.mxu0 0
      %1222 = vmatmul.mubr.bf16.gmra.mrb[0].mxu0 %v283
      %v1223 = vpop.f32.mrb[0].mxu0
      %v1224 = vadd.f32 0.0, %v1223
      %v1225 = vpop.f32.mrb[0].mxu0
      %v1226 = vpop.f32.mrb[0].mxu0
      %v1227 = vadd.f32 0.0, %v1226
      %v1228 = vpop.f32.mrb[0].mxu0
      %1229 = vmatprep.mubr.bf16.mxu0 0
      %1230 = vmatmul.mubr.bf16.gmra.mrb[0].mxu0 %v286
      %v1231 = vpop.f32.mrb[0].mxu0
      %v1232 = vadd.f32 0.0, %v1231
      %v1233 = vpop.f32.mrb[0].mxu0
      %v1234 = vpop.f32.mrb[0].mxu0
      %v1235 = vadd.f32 0.0, %v1234
      %v1236 = vpop.f32.mrb[0].mxu0
      %1237 = vmatprep.mubr.bf16.mxu0 0
      %1238 = vmatmul.mubr.bf16.gmra.mrb[0].mxu0 %v289
      %v1239 = vpop.f32.mrb[0].mxu0
      %v1240 = vadd.f32 0.0, %v1239
      %v1241 = vpop.f32.mrb[0].mxu0
      %v1242 = vpop.f32.mrb[0].mxu0
      %v1243 = vadd.f32 0.0, %v1242
      %v1244 = vpop.f32.mrb[0].mxu0
      %1245 = vdwg.mxu0
      %v1246 = vrot.slane %v1216, 3
      %v1247 = vrot.slane %v1219, 3
      %v1248 = vrot.slane %v1224, 3
      %v1249 = vrot.slane %v1227, 3
      %v1250 = vrot.slane %v1232, 3
      %v1251 = vrot.slane %v1235, 3
      %v1252 = vrot.slane %v1240, 3
      %v1253 = vrot.slane %v1243, 3
      %vm1254 = vcmp.lt.s32.totalorder %v447, 5
      %v1255 = vsel %vm1254, %v1252, %v1253
      %v1256 = vsel %vm1254, %v1251, %v1252
      %v1257 = vsel %vm1254, %v1250, %v1251
      %v1258 = vsel %vm1254, %v1249, %v1250
      %v1259 = vsel %vm1254, %v1248, %v1249
      %v1260 = vsel %vm1254, %v1247, %v1248
      %v1261 = vsel %vm1254, %v1246, %v1247
      %v1262 = vsel %vm1254, %v1253, %v1246
      %v1263 = vadd.f32 %v1152, %v1261
      %v1264 = vadd.f32 %v1153, %v1260
      %v1265 = vadd.f32 %v1154, %v1259
      %v1266 = vadd.f32 %v1155, %v1258
      %v1267 = vadd.f32 %v1156, %v1257
      %v1268 = vadd.f32 %v1157, %v1256
      %v1269 = vadd.f32 %v1158, %v1255
      %v1270 = vadd.f32 %v1159, %v1262
      %v1271 = vmax.f32 %v1263, 0.0
      %v1272 = vmax.f32 %v1264, 0.0
      %v1273 = vmax.f32 %v1265, 0.0
      %v1274 = vmax.f32 %v1266, 0.0
      %v1275 = vmax.f32 %v1267, 0.0
      %v1276 = vmax.f32 %v1268, 0.0
      %v1277 = vmax.f32 %v1269, 0.0
      %v1278 = vmax.f32 %v1270, 0.0
      %vm1279 = vcmp.le.s32.totalorder %v447, 4
      %v1280 = vsel %vm1279, 1, 0
      %vm1281 = vcmp.eq.s32.totalorder %v1280, 1
      %v1282 = vsel %vm1281, %v1271, 0.0
      %v1283 = vsel %vm1281, %v1272, 0.0
      %v1284 = vsel %vm1281, %v1273, 0.0
      %v1285 = vsel %vm1281, %v1274, 0.0
      %v1286 = vsel %vm1281, %v1275, 0.0
      %v1287 = vsel %vm1281, %v1276, 0.0
      %v1288 = vsel %vm1281, %v1277, 0.0
      %v1289 = vsel %vm1281, %v1278, 0.0
      %v1290 = vsel %vm484, %v1282, -inf
      %v1291 = vrot.slane %v1290, 4
      %v1292 = vmax.f32 %v1290, %v1291
      %v1293 = vrot.slane %v1292, 2
      %v1294 = vmax.f32 %v1292, %v1293
      %v1295 = vrot.slane %v1294, 1
      %v1296 = vmax.f32 %v1294, %v1295
      %v1297 = vsel %vm484, %v1283, -inf
      %v1298 = vrot.slane %v1297, 4
      %v1299 = vmax.f32 %v1297, %v1298
      %v1300 = vrot.slane %v1299, 2
      %v1301 = vmax.f32 %v1299, %v1300
      %v1302 = vrot.slane %v1301, 1
      %v1303 = vmax.f32 %v1301, %v1302
      %v1304 = vsel %vm484, %v1284, -inf
      %v1305 = vrot.slane %v1304, 4
      %v1306 = vmax.f32 %v1304, %v1305
      %v1307 = vrot.slane %v1306, 2
      %v1308 = vmax.f32 %v1306, %v1307
      %v1309 = vrot.slane %v1308, 1
      %v1310 = vmax.f32 %v1308, %v1309
      %v1311 = vsel %vm484, %v1285, -inf
      %v1312 = vrot.slane %v1311, 4
      %v1313 = vmax.f32 %v1311, %v1312
      %v1314 = vrot.slane %v1313, 2
      %v1315 = vmax.f32 %v1313, %v1314
      %v1316 = vrot.slane %v1315, 1
      %v1317 = vmax.f32 %v1315, %v1316
      %v1318 = vsel %vm484, %v1286, -inf
      %v1319 = vrot.slane %v1318, 4
      %v1320 = vmax.f32 %v1318, %v1319
      %v1321 = vrot.slane %v1320, 2
      %v1322 = vmax.f32 %v1320, %v1321
      %v1323 = vrot.slane %v1322, 1
      %v1324 = vmax.f32 %v1322, %v1323
      %v1325 = vsel %vm484, %v1287, -inf
      %v1326 = vrot.slane %v1325, 4
      %v1327 = vmax.f32 %v1325, %v1326
      %v1328 = vrot.slane %v1327, 2
      %v1329 = vmax.f32 %v1327, %v1328
      %v1330 = vrot.slane %v1329, 1
      %v1331 = vmax.f32 %v1329, %v1330
      %v1332 = vsel %vm484, %v1288, -inf
      %v1333 = vrot.slane %v1332, 4
      %v1334 = vmax.f32 %v1332, %v1333
      %v1335 = vrot.slane %v1334, 2
      %v1336 = vmax.f32 %v1334, %v1335
      %v1337 = vrot.slane %v1336, 1
      %v1338 = vmax.f32 %v1336, %v1337
      %v1339 = vsel %vm484, %v1289, -inf
      %v1340 = vrot.slane %v1339, 4
      %v1341 = vmax.f32 %v1339, %v1340
      %v1342 = vrot.slane %v1341, 2
      %v1343 = vmax.f32 %v1341, %v1342
      %v1344 = vrot.slane %v1343, 1
      %v1345 = vmax.f32 %v1343, %v1344
      %vm1354 = vcmask 1041409
      %v1355 = vsel %vm1354, %v498, %v491
      %vm1356 = vcmask 1042434
      %v1357 = vsel %vm1356, %v505, %v1355
      %vm1358 = vcmask 1043459
      %v1359 = vsel %vm1358, %v512, %v1357
      %vm1360 = vcmask 1044484
      %v1361 = vsel %vm1360, %v519, %v1359
      %vm1362 = vcmask 1045509
      %v1363 = vsel %vm1362, %v526, %v1361
      %vm1364 = vcmask 1046534
      %v1365 = vsel %vm1364, %v533, %v1363
      %vm1366 = vcmask 1047559
      %v1367 = vsel %vm1366, %v540, %v1365
      %v1377 = vsel %vm1354, %v853, %v846
      %v1378 = vsel %vm1356, %v860, %v1377
      %v1379 = vsel %vm1358, %v867, %v1378
      %v1380 = vsel %vm1360, %v874, %v1379
      %v1381 = vsel %vm1362, %v881, %v1380
      %v1382 = vsel %vm1364, %v888, %v1381
      %v1383 = vsel %vm1366, %v895, %v1382
      %1384 = vrot.lane.b32.xlu0 %v1383, 16
      %v1385 = vpop.permute.xlu0 %1384
      %v1395 = vsel %vm1354, %v1303, %v1296
      %v1396 = vsel %vm1356, %v1310, %v1395
      %v1397 = vsel %vm1358, %v1317, %v1396
      %v1398 = vsel %vm1360, %v1324, %v1397
      %v1399 = vsel %vm1362, %v1331, %v1398
      %v1400 = vsel %vm1364, %v1338, %v1399
      %v1401 = vsel %vm1366, %v1345, %v1400
      %1402 = vrot.lane.b32.xlu0 %v1401, 32
      %v1403 = vpop.permute.xlu0 %1402
      %v1405 = vsel %vm484, %v1367, %v1385
      %v1406 = vsel %vm278, %v1405, %v1403
      %v1407 = vld [vmem:[%s3] sm:$0x1]
      %v1409 = vlaneseq
      %v1410 = vshrl.u32 %v1409, 7
      %v1411 = vsub.s32 0, %v1410
      %v1412 = vrot.slane %v1407, %v1411
      %v1414 = vmul.f32 %v1406, %v1412
      %vm1415 = vcmask 392192
      %v1416 = vsel %vm1415, %v1414, 0.0
      %1417 = vadd.xlane.f32.xlu0 %v1416
      %v1418 = vpop.xlane.xlu0 %1417
      %s1419 = sld [smem:[#allocation2]]
      %v1420 = vstv %s1419
      %v1421 = vadd.f32 %v1418, %v1420
      %v1422 = vxor.u32 %v1421, 2147483648
      %v1423 = vmul.f32 %v1422, 1.442695
      %v1424 = vpow.pop %v1423
      %v1425 = vadd.f32 %v1424, 1.0
      %v1426 = vrcp.pop %v1425
      %v1427 = vmul.f32 1.0, %v1426
      %vm1428 = vcmask 7168
      %1429 = vst.msk [vmem:[%s225] sm:$0xff] %vm1428, %v1427
      %p1430 = scmp.lt.s32.totalorder %s17, 1
      %s1431 = scalar_select %p1430, %s17, 1
      %s1432 = smul.addr %s1431, 8
      %s1433 = scalar_lea.vmem %s5, %s1432
      // Predicated region
      $region41: #{bertcnn_head.1} parent=39 // pred_check
        %p1434 = pneg %p145
      $region42: #{bertcnn_head.1} parent=39 // pred_check_branch
        %1436 = sbr.rel (%p1434) target = $region44
      $region43: #{bertcnn_head.1} parent=39 // pred_region
        _
      $region44: #{bertcnn_head.1} parent=39 // pred_fallthru
        _
    $region40: #{bertcnn_head.1} parent=5 // pred_fallthru
      _
    %p1437 = scmp.le.s32.totalorder 2, %s12
    // Predicated region
    $region45: #{bertcnn_head.1} parent=5 // pred_check
      %p1438 = pneg %p1437
    $region46: #{bertcnn_head.1} parent=5 // pred_check_branch
      %1440 = sbr.rel (%p1438) target = $region48
    $region47: #{bertcnn_head.1} parent=5 // pred_region
      %s1441 = ssub.s32 %s12, 2
      // Predicated region
      $region49: #{bertcnn_head.1} parent=47 // pred_check
        %p1442 = pneg %p151
      $region50: #{bertcnn_head.1} parent=47 // pred_check_branch
        %1444 = sbr.rel (%p1442) target = $region52
      $region51: #{bertcnn_head.1} parent=47 // pred_region
        %p1445 = scmp.lt.s32.totalorder %s18, 1
        %s1446 = scalar_select %p1445, %s18, 1
        %s1447 = smul.addr %s1446, 8
        %s1448 = scalar_lea.vmem %s5, %s1447
      $region52: #{bertcnn_head.1} parent=47 // pred_fallthru
        _
    $region48: #{bertcnn_head.1} parent=5 // pred_fallthru
      _
  $region6: #{bertcnn_head.1} parent=0 // loop_footer
    %s16 = sadd.s32 1, %s12
  $region7: #{bertcnn_head.1} parent=0 // loop_footer_branch
    %11 = sbr.rel target = $region3
  $region8: #{bertcnn_head.1} parent=0 // loop_exit
    _

</llo_original>
